<compile_context>
chip_gen: v7x
topology: tpu7x:2x2x1
jax: 0.10.0
libtpu: 0.0.40
codegen_flags: <defaults>
</compile_context>

<pallas_src>
import functools

import numpy as np
import jax
import jax.numpy as jnp
from jax.experimental import pallas as pl
from jax.experimental.pallas import tpu as pltpu


# ---------------------------------------------------------------------------
# Host-side construction of the static resampling / gaussian matrices
# ---------------------------------------------------------------------------

def bilinear_matrix(n_out, n_in):
    """Row-stochastic M so that y = M @ x is 1-D bilinear resampling with
    align_corners=True (PyTorch F.interpolate semantics)."""
    M = np.zeros((n_out, n_in), dtype=np.float64)
    if n_out == 1:
        M[0, 0] = 1.0
        return M.astype(np.float32)
    scale = (n_in - 1) / (n_out - 1)
    for i in range(n_out):
        src = i * scale
        i0 = min(max(int(np.floor(src)), 0), n_in - 1)
        i1 = min(i0 + 1, n_in - 1)
        f = src - i0
        M[i, i0] += 1.0 - f
        M[i, i1] += f
    return M.astype(np.float32)


def gauss1d_matrix(n):
    """1-D conv with kernel [1,2,1]/4, zero padding=1.  The GaussFilter 3x3
    kernel is outer([1,2,1],[1,2,1])/16, i.e. separable."""
    k = (0.25, 0.5, 0.25)
    G = np.zeros((n, n), dtype=np.float32)
    for i in range(n):
        for d, kv in zip((-1, 0, 1), k):
            j = i + d
            if 0 <= j < n:
                G[i, j] += kv
    return G


def make_gauss_matrices(H, W):
    hs, ws = H // 32, W // 32
    Dh, Dw = bilinear_matrix(hs, H), bilinear_matrix(ws, W)
    Gh, Gw = gauss1d_matrix(hs), gauss1d_matrix(ws)
    Gh3, Gw3 = Gh @ Gh @ Gh, Gw @ Gw @ Gw
    A = (Gh3 @ Dh).astype(np.float32)          # (hs, H)   gauss^3 . down_H
    Bm = (Dw.T @ Gw3.T).astype(np.float32)     # (W, ws)   down_W^T . gauss^3^T
    uh = bilinear_matrix(H, hs)                # (H, hs)   up_H
    uwT = bilinear_matrix(W, ws).T             # (ws, W)   up_W^T
    return jnp.asarray(A), jnp.asarray(Bm), jnp.asarray(uh), jnp.asarray(uwT)


# ---------------------------------------------------------------------------
# Generation-aware VMEM planning
# ---------------------------------------------------------------------------

def _vmem_plan():
    """(tile_budget_bytes, vmem_limit_bytes) chosen from physical VMEM."""
    cap = 64 * 1024 * 1024
    try:
        cap = int(getattr(pltpu.get_tpu_info(), "vmem_capacity_bytes", cap))
    except Exception:
        pass
    if cap >= 96 * 1024 * 1024:                 # v5e / v6e: 128 MiB physical
        return 48 * 1024 * 1024, 80 * 1024 * 1024
    return 24 * 1024 * 1024, 44 * 1024 * 1024   # v7x: 64 MiB physical


def _pick_h_tile(H, *, step, budget, footprint, max_th=None):
    """Largest H-tile (divides H; multiple of `step` or == H) whose modelled
    VMEM footprint fits `budget`.  If nothing fits the soft budget, the
    smallest legal tile is returned and the caller raises vmem_limit_bytes to
    cover its (accurately modelled) footprint."""
    cands = sorted({t for t in (H, 1024, 512, 256, 128, 64, 32, 16, 8)
                    if t <= H and H % t == 0 and (t == H or t % step == 0)},
                   reverse=True)
    if max_th is not None:
        capped = [t for t in cands if t <= max_th]
        if capped:
            cands = capped
    for t in cands:
        if footprint(t) <= budget:
            return t
    return cands[-1]


# ---------------------------------------------------------------------------
# Pallas kernels
# ---------------------------------------------------------------------------

def _gauss_down_kernel(x_ref, a_ref, bm_ref, y_ref, *, n_ch, h_axis, hs_first):
    """Phase 1: y_small[c] = sum_over_H_tiles A_tile @ style[c]_tile @ Bm.

    x_ref  : (1, n_ch, TH, W)   style channel(s), read straight from input x
    a_ref  : (hs, TH)           A columns for this H-tile
    bm_ref : (W, ws)
    y_ref  : (1, n_ch, hs, ws)  f32 output block, resident across the h axis
    """
    @pl.when(pl.program_id(h_axis) == 0)
    def _():
        y_ref[...] = jnp.zeros_like(y_ref)

    a = a_ref[...]
    bm = bm_ref[...]
    for c in range(n_ch):
        xc = x_ref[0, c]
        if hs_first:            # hs <= ws: (A@x)@Bm keeps the small dim last
            part = jnp.dot(a, xc, preferred_element_type=jnp.float32)   # (hs, W)
            contrib = jnp.dot(part, bm, preferred_element_type=jnp.float32)
        else:                   # ws < hs: A@(x@Bm)
            part = jnp.dot(xc, bm, preferred_element_type=jnp.float32)  # (TH, ws)
            contrib = jnp.dot(a, part, preferred_element_type=jnp.float32)
        y_ref[0, c] += contrib


def _upsample_mix_kernel(x_ref, zw_ref, uh_ref, wc_ref, o_ref):
    """Phase 2 (fused epilogue): out[c] = Wc[c,:]@content + up_H(zW)[:, c-slab].

    x_ref  : (1, 3, TH, W)  content channels of the packed input (H-tile)
    zw_ref : (1, hs, 3*W)   half-upsampled, channel-mixed small map (channels
                            stacked along lanes -> one lane-dense matmul)
    uh_ref : (TH, hs)       bilinear-up rows for this H-tile
    wc_ref : (3, 3) SMEM    folded content weights
    o_ref  : (1, 3, TH, W)  final model output tile
    """
    up_all = jnp.dot(uh_ref[...], zw_ref[0],
                     preferred_element_type=jnp.float32)        # (TH, 3W)
    c0 = x_ref[0, 0]
    c1 = x_ref[0, 1]
    c2 = x_ref[0, 2]
    W = c0.shape[-1]
    for o in range(3):
        mixed = wc_ref[o, 0] * c0 + wc_ref[o, 1] * c1 + wc_ref[o, 2] * c2
        o_ref[0, o] = (mixed + up_all[:, o * W:(o + 1) * W]).astype(o_ref.dtype)


# ---------------------------------------------------------------------------
# pallas_call wrappers
# ---------------------------------------------------------------------------

def gauss_downsample_pallas(x, A, Bm):
    """x: (B, 6, H, W); reads style channels 3:6 in place.
    Returns (B, 3, hs, ws) = gauss^3(bilinear_down(style)) (un-normalized)."""
    B, _, H, W = x.shape
    hs, ws = A.shape[0], Bm.shape[1]
    hs_first = hs <= ws
    budget, limit = _vmem_plan()

    # Merge the 3 style channels into one grid step when B >= 2; with B == 1
    # keep the channel axis so a v7x megacore still has >= 2 parallel programs
    # (the h axis is a reduction and cannot be parallel).
    merge = B >= 2
    n_ch = 3 if merge else 1

    def footprint(t):
        io = 2 * n_ch * t * W * 4 + 2 * n_ch * max(hs, 8) * max(ws, 128) * 4
        mats = 2 * hs * t * 4 + 2 * W * ws * 4
        part = (max(hs, 8) * W * 4) if hs_first else (t * max(ws, 128) * 4)
        return io + mats + n_ch * part + (2 << 20)     # + Mosaic scratch margin

    TH = _pick_h_tile(H, step=128, budget=budget, footprint=footprint)
    nH = H // TH
    limit = max(limit, footprint(TH) + (8 << 20))

    kern = functools.partial(_gauss_down_kernel, n_ch=n_ch,
                             h_axis=(1 if merge else 2), hs_first=hs_first)

    if merge:
        grid = (B, nH)
        in_specs = [
            pl.BlockSpec((1, 3, TH, W), lambda b, h: (b, 1, h, 0)),
            pl.BlockSpec((hs, TH), lambda b, h: (0, h)),
            pl.BlockSpec((W, ws), lambda b, h: (0, 0)),
        ]
        out_specs = pl.BlockSpec((1, 3, hs, ws), lambda b, h: (b, 0, 0, 0))
        dims = ("parallel", "arbitrary")
    else:
        grid = (B, 3, nH)
        in_specs = [
            pl.BlockSpec((1, 1, TH, W), lambda b, c, h: (b, c + 3, h, 0)),
            pl.BlockSpec((hs, TH), lambda b, c, h: (0, h)),
            pl.BlockSpec((W, ws), lambda b, c, h: (0, 0)),
        ]
        out_specs = pl.BlockSpec((1, 1, hs, ws), lambda b, c, h: (b, c, 0, 0))
        dims = ("parallel", "parallel", "arbitrary")

    return pl.pallas_call(
        kern,
        out_shape=jax.ShapeDtypeStruct((B, 3, hs, ws), jnp.float32),
        grid=grid,
        in_specs=in_specs,
        out_specs=out_specs,
        compiler_params=pltpu.CompilerParams(
            dimension_semantics=dims,
            vmem_limit_bytes=int(limit)),
    )(x, A, Bm)


def upsample_mix_pallas(x, zW, uh, Wc):
    """x: (B, 6, H, W) (content read in place), zW: (B, hs, 3*W) half-upsampled
    channel-stacked small map.  Returns the final (B, 3, H, W) model output."""
    B, _, H, W = x.shape
    hs = uh.shape[1]
    budget, limit = _vmem_plan()

    def footprint(t):
        io = 2 * 3 * t * W * 4 * 2                   # content in + output, 2x buffered
        uh_b = 2 * t * max(hs, 1) * 4
        zw_b = 2 * hs * 3 * W * 4
        tmps = 3 * t * W * 4 + 3 * t * W * 4         # up_all (t,3W) + per-channel mixes
        return io + uh_b + zw_b + tmps + (2 << 20)   # + Mosaic scratch margin

    # v7x megacore: with B == 1 cap TH at H/2 so there are >= 2 parallel programs.
    max_th = (H // 2) if (B == 1 and H >= 16) else None
    TH = _pick_h_tile(H, step=8, budget=budget, footprint=footprint, max_th=max_th)
    nH = H // TH
    limit = max(limit, footprint(TH) + (8 << 20))

    return pl.pallas_call(
        _upsample_mix_kernel,
        out_shape=jax.ShapeDtypeStruct((B, 3, H, W), jnp.float32),
        grid=(B, nH),
        in_specs=[
            pl.BlockSpec((1, 3, TH, W), lambda b, h: (b, 0, h, 0)),
            pl.BlockSpec((1, hs, 3 * W), lambda b, h: (b, 0, 0)),
            pl.BlockSpec((TH, hs), lambda b, h: (h, 0)),
            pl.BlockSpec((3, 3), lambda b, h: (0, 0),
                         memory_space=pltpu.MemorySpace.SMEM),
        ],
        out_specs=pl.BlockSpec((1, 3, TH, W), lambda b, h: (b, 0, h, 0)),
        compiler_params=pltpu.CompilerParams(
            dimension_semantics=("parallel", "parallel"),
            vmem_limit_bytes=int(limit)),
    )(x, zW, uh, Wc)


# ---------------------------------------------------------------------------
# Model
# ---------------------------------------------------------------------------

def init_params():
    kd, kw = jax.random.split(jax.random.PRNGKey(42))
    return {
        # TODO(synk): depth.MegaDepthModel definition not provided; stand-in is
        # a deterministic 1x1 conv 3 -> 1 channel ("depth map").
        "w_depth": 0.1 * jax.random.normal(kd, (1, 3), jnp.float32),
        # TODO(synk): water.GeneratorModel definition not provided; stand-in is
        # a deterministic 1x1 conv 7 -> 3 channels.
        "w_water": 0.1 * jax.random.normal(kw, (3, 7), jnp.float32),
    }


def image_water_style_forward(x, params):
    """x: (B, 6, H, W) NCHW float32; H, W multiples of 32 (W a multiple of 128
    keeps every output store lane-dense)."""
    B, _, H, W = x.shape
    A, Bm, uh, uwT = make_gauss_matrices(H, W)
    hs = A.shape[0]
    hp = jax.lax.Precision.HIGHEST

    # Fold the stub 1x1 convs: out = Wc @ content + Ws @ style_map.
    w_water, w_depth = params["w_water"], params["w_depth"]
    Wc = w_water[:, 0:3] + jnp.matmul(w_water[:, 3:4], w_depth, precision=hp)
    Ws = w_water[:, 4:7]

    # Phase 1: heavy read of style -> tiny un-normalized small gauss map.
    y_small = gauss_downsample_pallas(x, A, Bm)                 # (B, 3, hs, ws)

    # Tiny glue (O(B*3*hs*W) elems): GaussFilter's *global* min/max
    # normalization (matches the PyTorch x.min()/x.max(), i.e. over the whole
    # batch), the folded 3x3 style channel-mix (commutes with the linear,
    # row-stochastic bilinear upsample), and the NARROW half of the upsample
    # (z @ upW^T) with the 3 channels stacked along lanes.
    mn = jnp.min(y_small)
    mx = jnp.max(y_small)
    zn = (y_small - mn) * (1.0 / (mx - mn + 1e-8))
    z_mixed = jnp.einsum("oc,bcst->bost", Ws, zn, precision=hp)  # (B, 3, hs, ws)
    zW = jnp.einsum("bcst,tw->bcsw", z_mixed, uwT, precision=hp)  # (B, 3, hs, W)
    zW_stacked = zW.transpose(0, 2, 1, 3).reshape(B, hs, 3 * W)   # (B, hs, 3W)

    # Phase 2: fused H-upsample + content channel-mix + final write.
    return upsample_mix_pallas(x, zW_stacked, uh, Wc)           # (B, 3, H, W)


# ---------------------------------------------------------------------------
# Pure-JAX reference of the same forward (same stubs, un-fused structure)
# ---------------------------------------------------------------------------

def reference_forward(x, params):
    hp = jax.lax.Precision.HIGHEST
    _, _, H, W = x.shape
    A, Bm, uh, uwT = make_gauss_matrices(H, W)
    content, style = x[:, 0:3], x[:, 3:6]
    # GaussFilter: downsample + 3x separable gauss (identical pre-composed mats)
    y_small = jnp.einsum("sh,bchw,wt->bcst", A, style, Bm, precision=hp)
    mn, mx = jnp.min(y_small), jnp.max(y_small)
    yn = (y_small - mn) / (mx - mn + 1e-8)
    smap = jnp.einsum("Hs,bcst,tW->bcHW", uh, yn, uwT, precision=hp)
    # stub depth model + stub generator (1x1 convs), un-fused
    depth = jnp.einsum("oc,bchw->bohw", params["w_depth"], content, precision=hp)
    feat = jnp.concatenate([content, depth, smap], axis=1)
    return jnp.einsum("of,bfhw->bohw", params["w_water"], feat, precision=hp)


if __name__ == "__main__":
    B, H, W = 2, 64, 128       # H, W multiples of 32; W multiple of 128 -> lane-dense
    x = jax.random.normal(jax.random.PRNGKey(0), (B, 6, H, W), jnp.float32)
    params = init_params()

    fwd = jax.jit(image_water_style_forward)
    out = fwd(x, params)
    jax.block_until_ready(out)
    assert out.shape == (B, 3, H, W), out.shape
    assert bool(jnp.all(jnp.isfinite(out)))

    ref = reference_forward(x, params)
    err = float(jnp.max(jnp.abs(out - ref)))
    assert err < 5e-3, f"max abs err {err}"
    print("KERNEL_OK")
</pallas_src>

<mosaic_0001>
module attributes {stable_mosaic.version = 11 : i64} {
  func.func @_gauss_down_kernel(%arg0: i32, %arg1: i32, %arg2: memref<1x3x64x128xf32, #tpu.memory_space<vmem>>, %arg3: memref<2x64xf32, #tpu.memory_space<vmem>>, %arg4: memref<128x4xf32, #tpu.memory_space<vmem>>, %arg5: memref<1x3x2x4xf32, #tpu.memory_space<vmem>>) attributes {dimension_semantics = [#tpu.dimension_semantics<parallel>, #tpu.dimension_semantics<arbitrary>], iteration_bounds = array<i64: 2, 1>, scalar_prefetch = 0 : i64, scratch_operands = 0 : i64, tpu.core_type = #tpu.core_type<tc>, window_params = [{transform_indices = @transform_0, window_bounds = array<i64: 1, 3, 64, 128>}, {transform_indices = @transform_1, window_bounds = array<i64: 2, 64>}, {pipeline_mode = #tpu.pipeline_mode<synchronous>, transform_indices = @transform_2, window_bounds = array<i64: 128, 4>}, {transform_indices = @transform_3, window_bounds = array<i64: 1, 3, 2, 4>}]} {
    %c0_i32 = arith.constant 0 : i32
    %0 = arith.cmpi eq, %arg1, %c0_i32 : i32
    %1 = arith.extui %0 : i1 to i32
    %c0_i32_0 = arith.constant 0 : i32
    %2 = arith.cmpi ne, %1, %c0_i32_0 : i32
    scf.if %2 {
      %cst_43 = arith.constant 0.000000e+00 : f32
      %35 = vector.broadcast %cst_43 : f32 to vector<1x3x2x4xf32>
      %c0_44 = arith.constant 0 : index
      %c0_45 = arith.constant 0 : index
      %c0_46 = arith.constant 0 : index
      %c0_47 = arith.constant 0 : index
      %36 = vector.load %arg5[%c0_44, %c0_45, %c0_46, %c0_47] : memref<1x3x2x4xf32, #tpu.memory_space<vmem>>, vector<1x3x2x4xf32>
      tpu.vector_store %arg5[%c0_44, %c0_45, %c0_46, %c0_47], %35 {strides = array<i32>} : memref<1x3x2x4xf32, #tpu.memory_space<vmem>>, vector<1x3x2x4xf32>,
    } else {
    }
    %c0 = arith.constant 0 : index
    %c0_1 = arith.constant 0 : index
    %3 = vector.load %arg3[%c0, %c0_1] : memref<2x64xf32, #tpu.memory_space<vmem>>, vector<2x64xf32>
    %c0_2 = arith.constant 0 : index
    %c0_3 = arith.constant 0 : index
    %4 = vector.load %arg4[%c0_2, %c0_3] : memref<128x4xf32, #tpu.memory_space<vmem>>, vector<128x4xf32>
    %c0_4 = arith.constant 0 : index
    %c0_5 = arith.constant 0 : index
    %c0_6 = arith.constant 0 : index
    %c0_7 = arith.constant 0 : index
    %5 = vector.load %arg2[%c0_4, %c0_5, %c0_6, %c0_7] : memref<1x3x64x128xf32, #tpu.memory_space<vmem>>, vector<1x1x64x128xf32>
    %6 = vector.shape_cast %5 : vector<1x1x64x128xf32> to vector<64x128xf32>
    %cst = arith.constant dense<0.000000e+00> : vector<2x128xf32>
    %7 = tpu.matmul %3, %6, %cst {dimension_numbers = #tpu.dot_dimension_numbers<[1], [0], [0], [1], [0, 0, 1, 1], [], []>} : vector<2x64xf32>, vector<64x128xf32>, vector<2x128xf32> -> vector<2x128xf32>
    %cst_8 = arith.constant dense<0.000000e+00> : vector<2x4xf32>
    %8 = tpu.matmul %7, %4, %cst_8 {dimension_numbers = #tpu.dot_dimension_numbers<[1], [0], [0], [1], [0, 0, 1, 1], [], []>} : vector<2x128xf32>, vector<128x4xf32>, vector<2x4xf32> -> vector<2x4xf32>
    %c0_9 = arith.constant 0 : index
    %c0_10 = arith.constant 0 : index
    %c0_11 = arith.constant 0 : index
    %c0_12 = arith.constant 0 : index
    %9 = vector.load %arg5[%c0_9, %c0_10, %c0_11, %c0_12] : memref<1x3x2x4xf32, #tpu.memory_space<vmem>>, vector<1x1x2x4xf32>
    %10 = vector.shape_cast %9 : vector<1x1x2x4xf32> to vector<2x4xf32>
    %11 = arith.addf %10, %8 : vector<2x4xf32>
    %c0_13 = arith.constant 0 : index
    %c0_14 = arith.constant 0 : index
    %c0_15 = arith.constant 0 : index
    %c0_16 = arith.constant 0 : index
    %12 = vector.load %arg5[%c0_13, %c0_14, %c0_15, %c0_16] : memref<1x3x2x4xf32, #tpu.memory_space<vmem>>, vector<1x1x2x4xf32>
    %13 = vector.shape_cast %12 : vector<1x1x2x4xf32> to vector<2x4xf32>
    %14 = vector.shape_cast %11 : vector<2x4xf32> to vector<1x1x2x4xf32>
    tpu.vector_store %arg5[%c0_13, %c0_14, %c0_15, %c0_16], %14 {strides = array<i32>} : memref<1x3x2x4xf32, #tpu.memory_space<vmem>>, vector<1x1x2x4xf32>,
    %c0_17 = arith.constant 0 : index
    %c1 = arith.constant 1 : index
    %c0_18 = arith.constant 0 : index
    %c0_19 = arith.constant 0 : index
    %15 = vector.load %arg2[%c0_17, %c1, %c0_18, %c0_19] : memref<1x3x64x128xf32, #tpu.memory_space<vmem>>, vector<1x1x64x128xf32>
    %16 = vector.shape_cast %15 : vector<1x1x64x128xf32> to vector<64x128xf32>
    %cst_20 = arith.constant dense<0.000000e+00> : vector<2x128xf32>
    %17 = tpu.matmul %3, %16, %cst_20 {dimension_numbers = #tpu.dot_dimension_numbers<[1], [0], [0], [1], [0, 0, 1, 1], [], []>} : vector<2x64xf32>, vector<64x128xf32>, vector<2x128xf32> -> vector<2x128xf32>
    %cst_21 = arith.constant dense<0.000000e+00> : vector<2x4xf32>
    %18 = tpu.matmul %17, %4, %cst_21 {dimension_numbers = #tpu.dot_dimension_numbers<[1], [0], [0], [1], [0, 0, 1, 1], [], []>} : vector<2x128xf32>, vector<128x4xf32>, vector<2x4xf32> -> vector<2x4xf32>
    %c0_22 = arith.constant 0 : index
    %c1_23 = arith.constant 1 : index
    %c0_24 = arith.constant 0 : index
    %c0_25 = arith.constant 0 : index
    %19 = vector.load %arg5[%c0_22, %c1_23, %c0_24, %c0_25] : memref<1x3x2x4xf32, #tpu.memory_space<vmem>>, vector<1x1x2x4xf32>
    %20 = vector.shape_cast %19 : vector<1x1x2x4xf32> to vector<2x4xf32>
    %21 = arith.addf %20, %18 : vector<2x4xf32>
    %c0_26 = arith.constant 0 : index
    %c1_27 = arith.constant 1 : index
    %c0_28 = arith.constant 0 : index
    %c0_29 = arith.constant 0 : index
    %22 = vector.load %arg5[%c0_26, %c1_27, %c0_28, %c0_29] : memref<1x3x2x4xf32, #tpu.memory_space<vmem>>, vector<1x1x2x4xf32>
    %23 = vector.shape_cast %22 : vector<1x1x2x4xf32> to vector<2x4xf32>
    %24 = vector.shape_cast %21 : vector<2x4xf32> to vector<1x1x2x4xf32>
    tpu.vector_store %arg5[%c0_26, %c1_27, %c0_28, %c0_29], %24 {strides = array<i32>} : memref<1x3x2x4xf32, #tpu.memory_space<vmem>>, vector<1x1x2x4xf32>,
    %c0_30 = arith.constant 0 : index
    %c2 = arith.constant 2 : index
    %c0_31 = arith.constant 0 : index
    %c0_32 = arith.constant 0 : index
    %25 = vector.load %arg2[%c0_30, %c2, %c0_31, %c0_32] : memref<1x3x64x128xf32, #tpu.memory_space<vmem>>, vector<1x1x64x128xf32>
    %26 = vector.shape_cast %25 : vector<1x1x64x128xf32> to vector<64x128xf32>
    %cst_33 = arith.constant dense<0.000000e+00> : vector<2x128xf32>
    %27 = tpu.matmul %3, %26, %cst_33 {dimension_numbers = #tpu.dot_dimension_numbers<[1], [0], [0], [1], [0, 0, 1, 1], [], []>} : vector<2x64xf32>, vector<64x128xf32>, vector<2x128xf32> -> vector<2x128xf32>
    %cst_34 = arith.constant dense<0.000000e+00> : vector<2x4xf32>
    %28 = tpu.matmul %27, %4, %cst_34 {dimension_numbers = #tpu.dot_dimension_numbers<[1], [0], [0], [1], [0, 0, 1, 1], [], []>} : vector<2x128xf32>, vector<128x4xf32>, vector<2x4xf32> -> vector<2x4xf32>
    %c0_35 = arith.constant 0 : index
    %c2_36 = arith.constant 2 : index
    %c0_37 = arith.constant 0 : index
    %c0_38 = arith.constant 0 : index
    %29 = vector.load %arg5[%c0_35, %c2_36, %c0_37, %c0_38] : memref<1x3x2x4xf32, #tpu.memory_space<vmem>>, vector<1x1x2x4xf32>
    %30 = vector.shape_cast %29 : vector<1x1x2x4xf32> to vector<2x4xf32>
    %31 = arith.addf %30, %28 : vector<2x4xf32>
    %c0_39 = arith.constant 0 : index
    %c2_40 = arith.constant 2 : index
    %c0_41 = arith.constant 0 : index
    %c0_42 = arith.constant 0 : index
    %32 = vector.load %arg5[%c0_39, %c2_40, %c0_41, %c0_42] : memref<1x3x2x4xf32, #tpu.memory_space<vmem>>, vector<1x1x2x4xf32>
    %33 = vector.shape_cast %32 : vector<1x1x2x4xf32> to vector<2x4xf32>
    %34 = vector.shape_cast %31 : vector<2x4xf32> to vector<1x1x2x4xf32>
    tpu.vector_store %arg5[%c0_39, %c2_40, %c0_41, %c0_42], %34 {strides = array<i32>} : memref<1x3x2x4xf32, #tpu.memory_space<vmem>>, vector<1x1x2x4xf32>,
    return
  }
  func.func @transform_0(%arg0: i32, %arg1: i32) -> (i32, i32, i32, i32) {
    %c1_i32 = arith.constant 1 : i32
    %c0_i32 = arith.constant 0 : i32
    %c0_i32_0 = arith.constant 0 : i32
    return %arg0, %c1_i32, %arg1, %c0_i32 : i32, i32, i32, i32
  }
  func.func @transform_1(%arg0: i32, %arg1: i32) -> (i32, i32) {
    %c0_i32 = arith.constant 0 : i32
    %c0_i32_0 = arith.constant 0 : i32
    return %c0_i32, %arg1 : i32, i32
  }
  func.func @transform_2(%arg0: i32, %arg1: i32) -> (i32, i32) {
    %c0_i32 = arith.constant 0 : i32
    %c0_i32_0 = arith.constant 0 : i32
    %c0_i32_1 = arith.constant 0 : i32
    return %c0_i32, %c0_i32_0 : i32, i32
  }
  func.func @transform_3(%arg0: i32, %arg1: i32) -> (i32, i32, i32, i32) {
    %c0_i32 = arith.constant 0 : i32
    %c0_i32_0 = arith.constant 0 : i32
    %c0_i32_1 = arith.constant 0 : i32
    %c0_i32_2 = arith.constant 0 : i32
    return %arg0, %c0_i32, %c0_i32_0, %c0_i32_1 : i32, i32, i32, i32
  }
}

module attributes {stable_mosaic.version = 11 : i64} {
  func.func @_upsample_mix_kernel(%arg0: i32, %arg1: i32, %arg2: memref<1x3x64x128xf32, #tpu.memory_space<vmem>>, %arg3: memref<1x2x384xf32, #tpu.memory_space<vmem>>, %arg4: memref<64x2xf32, #tpu.memory_space<vmem>>, %arg5: memref<3x3xf32, #tpu.memory_space<smem>>, %arg6: memref<1x3x64x128xf32, #tpu.memory_space<vmem>>) attributes {dimension_semantics = [#tpu.dimension_semantics<parallel>, #tpu.dimension_semantics<parallel>], iteration_bounds = array<i64: 2, 1>, scalar_prefetch = 0 : i64, scratch_operands = 0 : i64, tpu.core_type = #tpu.core_type<tc>, window_params = [{transform_indices = @transform_0, window_bounds = array<i64: 1, 3, 64, 128>}, {transform_indices = @transform_1, window_bounds = array<i64: 1, 2, 384>}, {transform_indices = @transform_2, window_bounds = array<i64: 64, 2>}, {transform_indices = @transform_3, window_bounds = array<i64: 3, 3>}, {transform_indices = @transform_4, window_bounds = array<i64: 1, 3, 64, 128>}]} {
    %c0 = arith.constant 0 : index
    %c0_0 = arith.constant 0 : index
    %0 = vector.load %arg4[%c0, %c0_0] : memref<64x2xf32, #tpu.memory_space<vmem>>, vector<64x2xf32>
    %c0_1 = arith.constant 0 : index
    %c0_2 = arith.constant 0 : index
    %c0_3 = arith.constant 0 : index
    %1 = vector.load %arg3[%c0_1, %c0_2, %c0_3] : memref<1x2x384xf32, #tpu.memory_space<vmem>>, vector<1x2x384xf32>
    %2 = vector.shape_cast %1 : vector<1x2x384xf32> to vector<2x384xf32>
    %cst = arith.constant dense<0.000000e+00> : vector<64x384xf32>
    %3 = tpu.matmul %0, %2, %cst {dimension_numbers = #tpu.dot_dimension_numbers<[1], [0], [0], [1], [0, 0, 1, 1], [], []>} : vector<64x2xf32>, vector<2x384xf32>, vector<64x384xf32> -> vector<64x384xf32>
    %c0_4 = arith.constant 0 : index
    %c0_5 = arith.constant 0 : index
    %c0_6 = arith.constant 0 : index
    %c0_7 = arith.constant 0 : index
    %4 = vector.load %arg2[%c0_4, %c0_5, %c0_6, %c0_7] : memref<1x3x64x128xf32, #tpu.memory_space<vmem>>, vector<1x1x64x128xf32>
    %5 = vector.shape_cast %4 : vector<1x1x64x128xf32> to vector<64x128xf32>
    %c0_8 = arith.constant 0 : index
    %c1 = arith.constant 1 : index
    %c0_9 = arith.constant 0 : index
    %c0_10 = arith.constant 0 : index
    %6 = vector.load %arg2[%c0_8, %c1, %c0_9, %c0_10] : memref<1x3x64x128xf32, #tpu.memory_space<vmem>>, vector<1x1x64x128xf32>
    %7 = vector.shape_cast %6 : vector<1x1x64x128xf32> to vector<64x128xf32>
    %c0_11 = arith.constant 0 : index
    %c2 = arith.constant 2 : index
    %c0_12 = arith.constant 0 : index
    %c0_13 = arith.constant 0 : index
    %8 = vector.load %arg2[%c0_11, %c2, %c0_12, %c0_13] : memref<1x3x64x128xf32, #tpu.memory_space<vmem>>, vector<1x1x64x128xf32>
    %9 = vector.shape_cast %8 : vector<1x1x64x128xf32> to vector<64x128xf32>
    %c0_14 = arith.constant 0 : index
    %c0_15 = arith.constant 0 : index
    %10 = memref.load %arg5[%c0_14, %c0_15] : memref<3x3xf32, #tpu.memory_space<smem>>
    %11 = vector.broadcast %10 : f32 to vector<64x128xf32>
    %12 = arith.mulf %11, %5 : vector<64x128xf32>
    %c0_16 = arith.constant 0 : index
    %c1_17 = arith.constant 1 : index
    %13 = memref.load %arg5[%c0_16, %c1_17] : memref<3x3xf32, #tpu.memory_space<smem>>
    %14 = vector.broadcast %13 : f32 to vector<64x128xf32>
    %15 = arith.mulf %14, %7 : vector<64x128xf32>
    %16 = arith.addf %12, %15 : vector<64x128xf32>
    %c0_18 = arith.constant 0 : index
    %c2_19 = arith.constant 2 : index
    %17 = memref.load %arg5[%c0_18, %c2_19] : memref<3x3xf32, #tpu.memory_space<smem>>
    %18 = vector.broadcast %17 : f32 to vector<64x128xf32>
    %19 = arith.mulf %18, %9 : vector<64x128xf32>
    %20 = arith.addf %16, %19 : vector<64x128xf32>
    %21 = vector.extract_strided_slice %3 {offsets = [0, 0], sizes = [64, 128], strides = [1, 1]} : vector<64x384xf32> to vector<64x128xf32>
    %22 = arith.addf %20, %21 : vector<64x128xf32>
    %c0_20 = arith.constant 0 : index
    %c0_21 = arith.constant 0 : index
    %c0_22 = arith.constant 0 : index
    %c0_23 = arith.constant 0 : index
    %23 = vector.load %arg6[%c0_20, %c0_21, %c0_22, %c0_23] : memref<1x3x64x128xf32, #tpu.memory_space<vmem>>, vector<1x1x64x128xf32>
    %24 = vector.shape_cast %23 : vector<1x1x64x128xf32> to vector<64x128xf32>
    %25 = vector.shape_cast %22 : vector<64x128xf32> to vector<1x1x64x128xf32>
    tpu.vector_store %arg6[%c0_20, %c0_21, %c0_22, %c0_23], %25 {strides = array<i32>} : memref<1x3x64x128xf32, #tpu.memory_space<vmem>>, vector<1x1x64x128xf32>,
    %c1_24 = arith.constant 1 : index
    %c0_25 = arith.constant 0 : index
    %26 = memref.load %arg5[%c1_24, %c0_25] : memref<3x3xf32, #tpu.memory_space<smem>>
    %27 = vector.broadcast %26 : f32 to vector<64x128xf32>
    %28 = arith.mulf %27, %5 : vector<64x128xf32>
    %c1_26 = arith.constant 1 : index
    %c1_27 = arith.constant 1 : index
    %29 = memref.load %arg5[%c1_26, %c1_27] : memref<3x3xf32, #tpu.memory_space<smem>>
    %30 = vector.broadcast %29 : f32 to vector<64x128xf32>
    %31 = arith.mulf %30, %7 : vector<64x128xf32>
    %32 = arith.addf %28, %31 : vector<64x128xf32>
    %c1_28 = arith.constant 1 : index
    %c2_29 = arith.constant 2 : index
    %33 = memref.load %arg5[%c1_28, %c2_29] : memref<3x3xf32, #tpu.memory_space<smem>>
    %34 = vector.broadcast %33 : f32 to vector<64x128xf32>
    %35 = arith.mulf %34, %9 : vector<64x128xf32>
    %36 = arith.addf %32, %35 : vector<64x128xf32>
    %37 = vector.extract_strided_slice %3 {offsets = [0, 128], sizes = [64, 128], strides = [1, 1]} : vector<64x384xf32> to vector<64x128xf32>
    %38 = arith.addf %36, %37 : vector<64x128xf32>
    %c0_30 = arith.constant 0 : index
    %c1_31 = arith.constant 1 : index
    %c0_32 = arith.constant 0 : index
    %c0_33 = arith.constant 0 : index
    %39 = vector.load %arg6[%c0_30, %c1_31, %c0_32, %c0_33] : memref<1x3x64x128xf32, #tpu.memory_space<vmem>>, vector<1x1x64x128xf32>
    %40 = vector.shape_cast %39 : vector<1x1x64x128xf32> to vector<64x128xf32>
    %41 = vector.shape_cast %38 : vector<64x128xf32> to vector<1x1x64x128xf32>
    tpu.vector_store %arg6[%c0_30, %c1_31, %c0_32, %c0_33], %41 {strides = array<i32>} : memref<1x3x64x128xf32, #tpu.memory_space<vmem>>, vector<1x1x64x128xf32>,
    %c2_34 = arith.constant 2 : index
    %c0_35 = arith.constant 0 : index
    %42 = memref.load %arg5[%c2_34, %c0_35] : memref<3x3xf32, #tpu.memory_space<smem>>
    %43 = vector.broadcast %42 : f32 to vector<64x128xf32>
    %44 = arith.mulf %43, %5 : vector<64x128xf32>
    %c2_36 = arith.constant 2 : index
    %c1_37 = arith.constant 1 : index
    %45 = memref.load %arg5[%c2_36, %c1_37] : memref<3x3xf32, #tpu.memory_space<smem>>
    %46 = vector.broadcast %45 : f32 to vector<64x128xf32>
    %47 = arith.mulf %46, %7 : vector<64x128xf32>
    %48 = arith.addf %44, %47 : vector<64x128xf32>
    %c2_38 = arith.constant 2 : index
    %c2_39 = arith.constant 2 : index
    %49 = memref.load %arg5[%c2_38, %c2_39] : memref<3x3xf32, #tpu.memory_space<smem>>
    %50 = vector.broadcast %49 : f32 to vector<64x128xf32>
    %51 = arith.mulf %50, %9 : vector<64x128xf32>
    %52 = arith.addf %48, %51 : vector<64x128xf32>
    %53 = vector.extract_strided_slice %3 {offsets = [0, 256], sizes = [64, 128], strides = [1, 1]} : vector<64x384xf32> to vector<64x128xf32>
    %54 = arith.addf %52, %53 : vector<64x128xf32>
    %c0_40 = arith.constant 0 : index
    %c2_41 = arith.constant 2 : index
    %c0_42 = arith.constant 0 : index
    %c0_43 = arith.constant 0 : index
    %55 = vector.load %arg6[%c0_40, %c2_41, %c0_42, %c0_43] : memref<1x3x64x128xf32, #tpu.memory_space<vmem>>, vector<1x1x64x128xf32>
    %56 = vector.shape_cast %55 : vector<1x1x64x128xf32> to vector<64x128xf32>
    %57 = vector.shape_cast %54 : vector<64x128xf32> to vector<1x1x64x128xf32>
    tpu.vector_store %arg6[%c0_40, %c2_41, %c0_42, %c0_43], %57 {strides = array<i32>} : memref<1x3x64x128xf32, #tpu.memory_space<vmem>>, vector<1x1x64x128xf32>,
    return
  }
  func.func @transform_0(%arg0: i32, %arg1: i32) -> (i32, i32, i32, i32) {
    %c0_i32 = arith.constant 0 : i32
    %c0_i32_0 = arith.constant 0 : i32
    %c0_i32_1 = arith.constant 0 : i32
    return %arg0, %c0_i32, %arg1, %c0_i32_0 : i32, i32, i32, i32
  }
  func.func @transform_1(%arg0: i32, %arg1: i32) -> (i32, i32, i32) {
    %c0_i32 = arith.constant 0 : i32
    %c0_i32_0 = arith.constant 0 : i32
    %c0_i32_1 = arith.constant 0 : i32
    return %arg0, %c0_i32, %c0_i32_0 : i32, i32, i32
  }
  func.func @transform_2(%arg0: i32, %arg1: i32) -> (i32, i32) {
    %c0_i32 = arith.constant 0 : i32
    %c0_i32_0 = arith.constant 0 : i32
    return %arg1, %c0_i32 : i32, i32
  }
  func.func @transform_3(%arg0: i32, %arg1: i32) -> (i32, i32) {
    %c0_i32 = arith.constant 0 : i32
    %c0_i32_0 = arith.constant 0 : i32
    %c0_i32_1 = arith.constant 0 : i32
    return %c0_i32, %c0_i32_0 : i32, i32
  }
  func.func @transform_4(%arg0: i32, %arg1: i32) -> (i32, i32, i32, i32) {
    %c0_i32 = arith.constant 0 : i32
    %c0_i32_0 = arith.constant 0 : i32
    %c0_i32_1 = arith.constant 0 : i32
    return %arg0, %c0_i32, %arg1, %c0_i32_0 : i32, i32, i32, i32
  }
}

</mosaic_0001>

<llo_original>
// kernel: image_water_style_forward.3
$region0: #{image_water_style_forward.3}
  #allocation0 [shape = 'u32[]', space=smem, size = 0x4, offset = 0x4, fixed_abs, tag = 'smem constant byte address 0x4 - core index']
  #allocation1 [shape = 'u32[144,128]{1,0:T(1,128)}', space=vmem, size = 0x12000, scoped, tag = 'internal scratch']
  %s0 = inlined_call_operand.vmem [shape: f32[2,6,64,128], index: 0, kind: input, shape index: {}]
  %s1 = inlined_call_operand.vmem [shape: f32[2,2,384], index: 1, kind: input, shape index: {}]
  %s2 = inlined_call_operand.vmem [shape: f32[64,2], index: 2, kind: input, shape index: {}]
  %s3 = inlined_call_operand.vmem [shape: f32[3,3], index: 3, kind: input, shape index: {}]
  %s4 = inlined_call_operand.hbm [shape: f32[2,3,64,128], index: 4, kind: output, shape index: {}]
  %s5 = sld [smem:[#allocation0]]
  $region53: #{image_water_style_forward.3} parent=0
    _
  %s7 = ssub.s32 1, %s5
  %s8 = scalar_select 0, %s7, %s5
  $region1: #{image_water_style_forward.3} parent=0
    #allocation2 [shape = 'u8[2048]{0}', space=smem, size = 0x800, scoped, tag = 'input window, operand 3, single buffered']
    #allocation3 [shape = 's32[2]{0}', space=sflag, size = 0x8, scoped, tag = 'scoped memory for image_water_style_forward.3']
    #allocation4 [shape = 's32[2]{0}', space=sflag, size = 0x8, scoped, tag = 'scoped memory for image_water_style_forward.3']
    #allocation5 [shape = 'u8[196608]{0}', space=vmem, size = 0x30000, scoped, tag = 'output window, operand 0']
    %9 = vsyncpa [#allocation4], 0
    %10 = vsyncpa [#allocation3], 0
    %s11 = scalar_lea.sflag [#allocation3], 1
    %12 = vsyncpa %s11, 0
    loop: start=0, step=1, limit=4
    $region2: #{image_water_style_forward.3} parent=1 // loop_pre_header
      _
    $region3: #{image_water_style_forward.3} parent=1 // loop_header
      %s14 = sphi 0, %s18
      %p15 = scmp.ge.s32.totalorder %s14, 4
      %s21 = sphi 0, %s33
      %s22 = sphi 0, %s29
      %s23 = sphi 0, %s21
      %s24 = sphi 0, %s22
      %s25 = sphi 0, %s23
      %s26 = sphi 0, %s24
      %s38 = sphi 0, %s40
      %s41 = sphi 0, %s38
      %s42 = sphi 0, %s41
      %s58 = sphi 0, %s42
      %s64 = sphi 0, %s66
      %s67 = sphi 0, %s64
      %s68 = sphi 0, %s67
      %s84 = sphi 0, %s68
      %s90 = sphi 0, %s92
      %s93 = sphi 0, %s90
      %s94 = sphi 0, %s93
      %s110 = sphi 0, %s94
      %s114 = sphi 0, %s114
      %s116 = sphi 0, %s114
      %s117 = sphi 0, %s116
      %s131 = sphi 0, %s117
      %s139 = sphi 0, %s141
      %s142 = sphi 0, %s139
      %s143 = sphi 0, %s142
      %s159 = sphi 0, %s143
    $region4: #{image_water_style_forward.3} parent=1 // loop_header_branch
      %17 = sbr.rel (%p15) target = $region8
    $region5: #{image_water_style_forward.3} parent=1 // loop_body
      %s19 = ssub.s32 %s14, 1
      %s20 = ssub.s32 %s14, 2
      %s27 = sadd.s32 1, %s22
      %p28 = scmp.ge.s32.totalorder %s27, 1
      %s29 = scalar_select %p28, 0, %s27
      %s30 = sadd.s32 1, %s21
      %s31 = scalar_select %p28, %s30, %s21
      %p32 = scmp.ge.s32.totalorder %s31, 2
      %s33 = scalar_select %p32, 0, %s31
      %s34 = ssub.s32 %s21, %s33
      %s35 = ssub.s32 %s22, %s29
      %s36 = sor.u32 %s34, %s35
      %p37 = scmp.eq.s32.totalorder %s36, 0
      %s39 = sadd.s32 %s38, 1
      %s40 = scalar_select %p37, %s38, %s39
      %p43 = pneg %p37
      %p44 = scmp.eq.s32.totalorder %s14, 1
      %p45 = por %p43, %p44
      %p46 = scmp.ne.s32.totalorder %s38, %s41
      %p47 = scmp.eq.s32.totalorder %s14, 0
      %p48 = por %p46, %p47
      %p49 = scmp.ne.s32.totalorder %s38, %s41
      %p50 = scmp.eq.s32.totalorder %s19, 1
      %p51 = por %p49, %p50
      %p52 = scmp.ne.s32.totalorder %s41, %s42
      %p53 = scmp.eq.s32.totalorder %s19, 0
      %p54 = por %p52, %p53
      %p55 = scmp.ne.s32.totalorder %s41, %s42
      %p56 = scmp.eq.s32.totalorder %s20, 1
      %p57 = por %p55, %p56
      %p59 = scmp.ne.s32.totalorder %s42, %s58
      %p60 = scmp.eq.s32.totalorder %s20, 0
      %p61 = por %p59, %p60
      %s62 = ssub.s32 %s21, %s33
      %p63 = scmp.eq.s32.totalorder %s62, 0
      %s65 = sadd.s32 %s64, 1
      %s66 = scalar_select %p63, %s64, %s65
      %p69 = pneg %p63
      %p70 = scmp.eq.s32.totalorder %s14, 1
      %p71 = por %p69, %p70
      %p72 = scmp.ne.s32.totalorder %s64, %s67
      %p73 = scmp.eq.s32.totalorder %s14, 0
      %p74 = por %p72, %p73
      %p75 = scmp.ne.s32.totalorder %s64, %s67
      %p76 = scmp.eq.s32.totalorder %s19, 1
      %p77 = por %p75, %p76
      %p78 = scmp.ne.s32.totalorder %s67, %s68
      %p79 = scmp.eq.s32.totalorder %s19, 0
      %p80 = por %p78, %p79
      %p81 = scmp.ne.s32.totalorder %s67, %s68
      %p82 = scmp.eq.s32.totalorder %s20, 1
      %p83 = por %p81, %p82
      %p85 = scmp.ne.s32.totalorder %s68, %s84
      %p86 = scmp.eq.s32.totalorder %s20, 0
      %p87 = por %p85, %p86
      %s88 = ssub.s32 %s22, %s29
      %p89 = scmp.eq.s32.totalorder %s88, 0
      %s91 = sadd.s32 %s90, 1
      %s92 = scalar_select %p89, %s90, %s91
      %p95 = pneg %p89
      %p96 = scmp.eq.s32.totalorder %s14, 1
      %p97 = por %p95, %p96
      %p98 = scmp.ne.s32.totalorder %s90, %s93
      %p99 = scmp.eq.s32.totalorder %s14, 0
      %p100 = por %p98, %p99
      %p101 = scmp.ne.s32.totalorder %s90, %s93
      %p102 = scmp.eq.s32.totalorder %s19, 1
      %p103 = por %p101, %p102
      %p104 = scmp.ne.s32.totalorder %s93, %s94
      %p105 = scmp.eq.s32.totalorder %s19, 0
      %p106 = por %p104, %p105
      %p107 = scmp.ne.s32.totalorder %s93, %s94
      %p108 = scmp.eq.s32.totalorder %s20, 1
      %p109 = por %p107, %p108
      %p111 = scmp.ne.s32.totalorder %s94, %s110
      %p112 = scmp.eq.s32.totalorder %s20, 0
      %p113 = por %p111, %p112
      %s115 = sadd.s32 %s114, 1
      %p118 = scmp.eq.s32.totalorder %s14, 1
      %p119 = scmp.ne.s32.totalorder %s114, %s116
      %p120 = scmp.eq.s32.totalorder %s14, 0
      %p121 = por %p119, %p120
      %p122 = scmp.ne.s32.totalorder %s114, %s116
      %p123 = scmp.eq.s32.totalorder %s19, 1
      %p124 = por %p122, %p123
      %p125 = scmp.ne.s32.totalorder %s116, %s117
      %p126 = scmp.eq.s32.totalorder %s19, 0
      %p127 = por %p125, %p126
      %p128 = scmp.ne.s32.totalorder %s116, %s117
      %p129 = scmp.eq.s32.totalorder %s20, 1
      %p130 = por %p128, %p129
      %p132 = scmp.ne.s32.totalorder %s117, %s131
      %p133 = scmp.eq.s32.totalorder %s20, 0
      %p134 = por %p132, %p133
      %s135 = ssub.s32 %s21, %s33
      %s136 = ssub.s32 %s22, %s29
      %s137 = sor.u32 %s135, %s136
      %p138 = scmp.eq.s32.totalorder %s137, 0
      %s140 = sadd.s32 %s139, 1
      %s141 = scalar_select %p138, %s139, %s140
      %p144 = pneg %p138
      %p145 = scmp.eq.s32.totalorder %s14, 1
      %p146 = por %p144, %p145
      %p147 = scmp.ne.s32.totalorder %s139, %s142
      %p148 = scmp.eq.s32.totalorder %s14, 0
      %p149 = por %p147, %p148
      %p150 = scmp.ne.s32.totalorder %s139, %s142
      %p151 = scmp.eq.s32.totalorder %s19, 1
      %p152 = por %p150, %p151
      %p153 = scmp.ne.s32.totalorder %s142, %s143
      %p154 = scmp.eq.s32.totalorder %s19, 0
      %p155 = por %p153, %p154
      %p156 = scmp.ne.s32.totalorder %s142, %s143
      %p157 = scmp.eq.s32.totalorder %s20, 1
      %p158 = por %p156, %p157
      %p160 = scmp.ne.s32.totalorder %s143, %s159
      %p161 = scmp.eq.s32.totalorder %s20, 0
      %p162 = por %p160, %p161
      %p163 = scmp.le.s32.totalorder 1, %s14
      %p164 = scmp.lt.s32.totalorder %s14, 3
      %p165 = pnand %p163, %p164
      %p166 = pneg %p165
      // Predicated region
      $region9: #{image_water_style_forward.3} parent=5 // pred_check
        _
      $region10: #{image_water_style_forward.3} parent=5 // pred_check_branch
        %168 = sbr.rel (%p165) target = $region12
      $region11: #{image_water_style_forward.3} parent=5 // pred_region
        %s169 = ssub.s32 %s14, 1
        // Predicated region
        $region13: #{image_water_style_forward.3} parent=11 // pred_check
          %p170 = pneg %p106
        $region14: #{image_water_style_forward.3} parent=11 // pred_check_branch
          %172 = sbr.rel (%p170) target = $region16
        $region15: #{image_water_style_forward.3} parent=11 // pred_region
          %s173 = smul.u32 8, %s24
          %p174 = scmp.lt.s32.totalorder %s173, 7
          %s175 = scalar_select %p174, %s173, 7
          %s176 = smul.addr %s175, 8
          %s177 = scalar_lea.vmem %s2, %s176
          %s178 = smul.u32 8, %s24
        $region16: #{image_water_style_forward.3} parent=11 // pred_fallthru
          _
        // Predicated region
        $region17: #{image_water_style_forward.3} parent=11 // pred_check
          %p179 = pneg %p127
        $region18: #{image_water_style_forward.3} parent=11 // pred_check_branch
          %181 = sbr.rel (%p179) target = $region20
        $region19: #{image_water_style_forward.3} parent=11 // pred_region
          %s183 = ssub.s32 64, 64
          %184 = vsyncadd [#allocation4], %s183
          %s186 = sshll.u32 %s3, 4
          %s187 = int_to_ptr.vmem [resolvable:$true] %s186
          %189 = dma.vmem_to_smem %s187, 64, [#allocation2], [#allocation4]
        $region20: #{image_water_style_forward.3} parent=11 // pred_fallthru
          _
      $region12: #{image_water_style_forward.3} parent=5 // pred_fallthru
        _
      %p190 = scmp.lt.s32.totalorder %s14, 2
      // Predicated region
      $region21: #{image_water_style_forward.3} parent=5 // pred_check
        %p191 = pneg %p190
      $region22: #{image_water_style_forward.3} parent=5 // pred_check_branch
        %193 = sbr.rel (%p191) target = $region24
      $region23: #{image_water_style_forward.3} parent=5 // pred_region
        // Predicated region
        $region25: #{image_water_style_forward.3} parent=23 // pred_check
          %p194 = pneg %p48
        $region26: #{image_water_style_forward.3} parent=23 // pred_check_branch
          %196 = sbr.rel (%p194) target = $region28
        $region27: #{image_water_style_forward.3} parent=23 // pred_region
          %s197 = smul.u32 8, %s22
          %p198 = scmp.lt.s32.totalorder %s21, 1
          %s199 = scalar_select %p198, %s21, 1
          %p200 = scmp.lt.s32.totalorder %s197, 7
          %s201 = scalar_select %p200, %s197, 7
          %s202 = smul.addr %s199, 48
          %s203 = sadd.s32 %s201, %s202
          %s204 = smul.addr %s203, 8
          %s205 = scalar_lea.vmem %s0, %s204
          %s206 = smul.u32 8, %s22
        $region28: #{image_water_style_forward.3} parent=23 // pred_fallthru
          _
        // Predicated region
        $region29: #{image_water_style_forward.3} parent=23 // pred_check
          %p207 = pneg %p74
        $region30: #{image_water_style_forward.3} parent=23 // pred_check_branch
          %209 = sbr.rel (%p207) target = $region32
        $region31: #{image_water_style_forward.3} parent=23 // pred_region
          %p210 = scmp.lt.s32.totalorder %s21, 1
          %s211 = scalar_select %p210, %s21, 1
          %s212 = smul.addr %s211, 3
          %s213 = smul.addr %s212, 2
          %s214 = scalar_lea.vmem %s1, %s213
        $region32: #{image_water_style_forward.3} parent=23 // pred_fallthru
          _
      $region24: #{image_water_style_forward.3} parent=5 // pred_fallthru
        _
      %p215 = scmp.le.s32.totalorder 1, %s14
      %p216 = scmp.lt.s32.totalorder %s14, 3
      %p217 = pnand %p215, %p216
      %p218 = pneg %p217
      // Predicated region
      $region33: #{image_water_style_forward.3} parent=5 // pred_check
        _
      $region34: #{image_water_style_forward.3} parent=5 // pred_check_branch
        %220 = sbr.rel (%p217) target = $region36
      $region35: #{image_water_style_forward.3} parent=5 // pred_region
        %s221 = ssub.s32 %s14, 1
        // Predicated region
        $region37: #{image_water_style_forward.3} parent=35 // pred_check
          %p222 = pneg %p127
        $region38: #{image_water_style_forward.3} parent=35 // pred_check_branch
          %224 = sbr.rel (%p222) target = $region40
        $region39: #{image_water_style_forward.3} parent=35 // pred_region
          %225 = dma.done [#allocation4], 64
        $region40: #{image_water_style_forward.3} parent=35 // pred_fallthru
          _
        %226 = sfence
        %s227 = smul.u32 8, %s24
        %p228 = scmp.lt.s32.totalorder %s23, 1
        %s229 = scalar_select %p228, %s23, 1
        %p230 = scmp.lt.s32.totalorder %s227, 7
        %s231 = scalar_select %p230, %s227, 7
        %s232 = smul.addr %s229, 48
        %s233 = sadd.s32 %s231, %s232
        %s234 = smul.addr %s233, 8
        %s235 = scalar_lea.vmem %s0, %s234
        %p236 = pneg %p54
        %p237 = pneg %p51
        %p238 = scmp.lt.s32.totalorder %s23, 1
        %s239 = scalar_select %p238, %s23, 1
        %s240 = smul.addr %s239, 3
        %s241 = smul.addr %s240, 2
        %s242 = scalar_lea.vmem %s1, %s241
        %p243 = pneg %p80
        %p244 = pneg %p77
        %s245 = smul.u32 8, %s24
        %p246 = scmp.lt.s32.totalorder %s245, 7
        %s247 = scalar_select %p246, %s245, 7
        %s248 = smul.addr %s247, 8
        %s249 = scalar_lea.vmem %s2, %s248
        %p250 = pneg %p106
        %p251 = pneg %p103
        %p252 = pneg %p127
        %p253 = pneg %p124
        %p254 = pneg %p155
        %p255 = pneg %p152
        %s256 = sand.u32 %s142, 1
        %s257 = scalar_lea.sflag [#allocation3], %s256
        %s258 = sand.u32 %s142, 1
        %s259 = smul.addr %s258, 192
        %s260 = scalar_lea.vmem [#allocation5], %s259
        %s261 = smul.u32 8, %s24
        %p262 = scmp.lt.s32.totalorder %s23, 1
        %s263 = scalar_select %p262, %s23, 1
        %p264 = scmp.lt.s32.totalorder %s261, 7
        %s265 = scalar_select %p264, %s261, 7
        %s266 = smul.addr %s263, 48
        %s267 = sadd.s32 %s265, %s266
        %s268 = smul.addr %s267, 8
        %s269 = scalar_lea.vmem %s0, %s268
        %s270 = smul.u32 8, %s24
        %p271 = scmp.lt.s32.totalorder %s23, 1
        %s272 = scalar_select %p271, %s23, 1
        %s273 = smul.addr %s272, 3
        %s274 = smul.addr %s273, 2
        %s275 = scalar_lea.vmem %s1, %s274
        %s276 = smul.u32 8, %s24
        %p277 = scmp.lt.s32.totalorder %s276, 7
        %s278 = scalar_select %p277, %s276, 7
        %s279 = smul.addr %s278, 8
        %s280 = scalar_lea.vmem %s2, %s279
        %s281 = smul.u32 8, %s24
        %s282 = smul.u32 8, %s24
        %v283 = vld [vmem:[%s280] sm:$0xff]
        %v284 = vld [vmem:[%s280 + $0x8] sm:$0xff]
        %v285 = vld [vmem:[%s280 + $0x10] sm:$0xff]
        %v286 = vld [vmem:[%s280 + $0x18] sm:$0xff]
        %v287 = vld [vmem:[%s280 + $0x20] sm:$0xff]
        %v288 = vld [vmem:[%s280 + $0x28] sm:$0xff]
        %v289 = vld [vmem:[%s280 + $0x30] sm:$0xff]
        %v290 = vld [vmem:[%s280 + $0x38] sm:$0xff]
        %v291 = vld [vmem:[%s275] sm:$0x3f]
        %v293 = vcombine.high %v291, %v291
        %v295 = vunpack.c.l.s4 1983009808
        %v296 = vunpack.c.0.s8 %v295
        %v297 = vlaneseq
        %v298 = vshrl.u32 %v297, 7
        %v299 = vsub.s32 %v296, %v298
        %v300 = vrot.slane %v291, %v299
        %v302 = vunpack.c.l.s4 1983009808
        %v303 = vunpack.c.0.s8 %v302
        %v304 = vlaneseq
        %v305 = vshrl.u32 %v304, 7
        %v306 = vsub.s32 %v303, %v305
        %v307 = vrot.slane %v293, %v306
        %v308 = vcombine.high %v300, %v300
        %vm309 = vcmask 15360
        %v311 = vsel %vm309, %v283, 0
        %v314 = vsel %vm309, %v284, 0
        %v317 = vsel %vm309, %v285, 0
        %v320 = vsel %vm309, %v286, 0
        %v323 = vsel %vm309, %v287, 0
        %v326 = vsel %vm309, %v288, 0
        %v329 = vsel %vm309, %v289, 0
        %v332 = vsel %vm309, %v290, 0
        %vm334 = vcmask 1041408
        %v335 = vsel %vm334, %v300, 0
        %v337 = vsel %vm334, %v308, 0
        %v339 = vsel %vm334, %v307, 0
        %341 = vmatprep.subr.mxu0 %v337
        %342 = vmatpush1.msra.mxu0 %v335
        %343 = vmatprep.subr.mxu0 0.0
        %344 = vmatpush1.msra.mxu0 0.0
        %345 = vmatprep.subr.mxu0 0.0
        %346 = vmatpush1.msra.mxu0 0.0
        %347 = vmatprep.subr.mxu0 0.0
        %348 = vmatpush1.msra.mxu0 0.0
        %349 = vmatprep.subr.mxu0 0.0
        %350 = vmatpush1.msra.mxu0 0.0
        %351 = vmatprep.subr.mxu0 0.0
        %352 = vmatpush1.msra.mxu0 0.0
        %353 = vmatprep.subr.mxu0 0.0
        %354 = vmatpush1.msra.mxu0 0.0
        %355 = vmatprep.subr.mxu0 0.0
        %356 = vmatpush1.msra.mxu0 0.0
        %357 = vmatprep.subr.mxu0 0.0
        %358 = vmatpush1.msra.mxu0 0.0
        %359 = vmatprep.subr.mxu0 0.0
        %360 = vmatpush1.msra.mxu0 0.0
        %361 = vmatprep.subr.mxu0 0.0
        %362 = vmatpush1.msra.mxu0 0.0
        %363 = vmatprep.subr.mxu0 0.0
        %364 = vmatpush1.msra.mxu0 0.0
        %365 = vmatprep.subr.mxu0 0.0
        %366 = vmatpush1.msra.mxu0 0.0
        %367 = vmatprep.subr.mxu0 0.0
        %368 = vmatpush1.msra.mxu0 0.0
        %369 = vmatprep.subr.mxu0 0.0
        %370 = vmatpush1.msra.mxu0 0.0
        %371 = vmatprep.subr.mxu0 0.0
        %372 = vmatpush1.msra.mxu0 0.0
        %373 = vmatprep.subr.mxu0 0.0
        %374 = vmatpush1.msra.mxu0 0.0
        %375 = vmatprep.subr.mxu0 0.0
        %376 = vmatpush1.msra.mxu0 0.0
        %377 = vmatprep.subr.mxu0 0.0
        %378 = vmatpush1.msra.mxu0 0.0
        %379 = vmatprep.subr.mxu0 0.0
        %380 = vmatpush1.msra.mxu0 0.0
        %381 = vmatprep.subr.mxu0 0.0
        %382 = vmatpush1.msra.mxu0 0.0
        %383 = vmatprep.subr.mxu0 0.0
        %384 = vmatpush1.msra.mxu0 0.0
        %385 = vmatprep.subr.mxu0 0.0
        %386 = vmatpush1.msra.mxu0 0.0
        %387 = vmatprep.subr.mxu0 0.0
        %388 = vmatpush1.msra.mxu0 0.0
        %389 = vmatprep.subr.mxu0 0.0
        %390 = vmatpush1.msra.mxu0 0.0
        %391 = vmatprep.subr.mxu0 0.0
        %392 = vmatpush1.msra.mxu0 0.0
        %393 = vmatprep.subr.mxu0 0.0
        %394 = vmatpush1.msra.mxu0 0.0
        %395 = vmatprep.subr.mxu0 0.0
        %396 = vmatpush1.msra.mxu0 0.0
        %397 = vmatprep.subr.mxu0 0.0
        %398 = vmatpush1.msra.mxu0 0.0
        %399 = vmatprep.subr.mxu0 0.0
        %400 = vmatpush1.msra.mxu0 0.0
        %401 = vmatprep.subr.mxu0 0.0
        %402 = vmatpush1.msra.mxu0 0.0
        %403 = vmatprep.subr.mxu0 0.0
        %404 = vmatpush1.msra.mxu0 0.0
        %405 = vmatprep.mubr.f32.mxu0 0.0
        %406 = vmatmul.mubr.f32.gmra.mrb[0].mxu0 %v311
        %v407 = vpop.f32.mrb[0].mxu0
        %v408 = vadd.f32 0.0, %v407
        %v409 = vpop.f32.mrb[0].mxu0
        %v410 = vadd.f32 0.0, %v409
        %411 = vmatprep.mubr.f32.mxu0 0.0
        %412 = vmatmul.mubr.f32.gmra.mrb[0].mxu0 %v314
        %v413 = vpop.f32.mrb[0].mxu0
        %v414 = vadd.f32 0.0, %v413
        %v415 = vpop.f32.mrb[0].mxu0
        %v416 = vadd.f32 0.0, %v415
        %417 = vmatprep.mubr.f32.mxu0 0.0
        %418 = vmatmul.mubr.f32.gmra.mrb[0].mxu0 %v317
        %v419 = vpop.f32.mrb[0].mxu0
        %v420 = vadd.f32 0.0, %v419
        %v421 = vpop.f32.mrb[0].mxu0
        %v422 = vadd.f32 0.0, %v421
        %423 = vmatprep.mubr.f32.mxu0 0.0
        %424 = vmatmul.mubr.f32.gmra.mrb[0].mxu0 %v320
        %v425 = vpop.f32.mrb[0].mxu0
        %v426 = vadd.f32 0.0, %v425
        %v427 = vpop.f32.mrb[0].mxu0
        %v428 = vadd.f32 0.0, %v427
        %429 = vmatprep.mubr.f32.mxu0 0.0
        %430 = vmatmul.mubr.f32.gmra.mrb[0].mxu0 %v323
        %v431 = vpop.f32.mrb[0].mxu0
        %v432 = vadd.f32 0.0, %v431
        %v433 = vpop.f32.mrb[0].mxu0
        %v434 = vadd.f32 0.0, %v433
        %435 = vmatprep.mubr.f32.mxu0 0.0
        %436 = vmatmul.mubr.f32.gmra.mrb[0].mxu0 %v326
        %v437 = vpop.f32.mrb[0].mxu0
        %v438 = vadd.f32 0.0, %v437
        %v439 = vpop.f32.mrb[0].mxu0
        %v440 = vadd.f32 0.0, %v439
        %441 = vmatprep.mubr.f32.mxu0 0.0
        %442 = vmatmul.mubr.f32.gmra.mrb[0].mxu0 %v329
        %v443 = vpop.f32.mrb[0].mxu0
        %v444 = vadd.f32 0.0, %v443
        %v445 = vpop.f32.mrb[0].mxu0
        %v446 = vadd.f32 0.0, %v445
        %447 = vmatprep.mubr.f32.mxu0 0.0
        %448 = vmatmul.mubr.f32.gmra.mrb[0].mxu0 %v332
        %v449 = vpop.f32.mrb[0].mxu0
        %v450 = vadd.f32 0.0, %v449
        %v451 = vpop.f32.mrb[0].mxu0
        %v452 = vadd.f32 0.0, %v451
        %453 = vdwg.mxu0
        %454 = vmatprep.subr.mxu0 0.0
        %455 = vmatpush1.msra.mxu0 %v339
        %456 = vmatprep.subr.mxu0 0.0
        %457 = vmatpush1.msra.mxu0 0.0
        %458 = vmatprep.subr.mxu0 0.0
        %459 = vmatpush1.msra.mxu0 0.0
        %460 = vmatprep.subr.mxu0 0.0
        %461 = vmatpush1.msra.mxu0 0.0
        %462 = vmatprep.subr.mxu0 0.0
        %463 = vmatpush1.msra.mxu0 0.0
        %464 = vmatprep.subr.mxu0 0.0
        %465 = vmatpush1.msra.mxu0 0.0
        %466 = vmatprep.subr.mxu0 0.0
        %467 = vmatpush1.msra.mxu0 0.0
        %468 = vmatprep.subr.mxu0 0.0
        %469 = vmatpush1.msra.mxu0 0.0
        %470 = vmatprep.subr.mxu0 0.0
        %471 = vmatpush1.msra.mxu0 0.0
        %472 = vmatprep.subr.mxu0 0.0
        %473 = vmatpush1.msra.mxu0 0.0
        %474 = vmatprep.subr.mxu0 0.0
        %475 = vmatpush1.msra.mxu0 0.0
        %476 = vmatprep.subr.mxu0 0.0
        %477 = vmatpush1.msra.mxu0 0.0
        %478 = vmatprep.subr.mxu0 0.0
        %479 = vmatpush1.msra.mxu0 0.0
        %480 = vmatprep.subr.mxu0 0.0
        %481 = vmatpush1.msra.mxu0 0.0
        %482 = vmatprep.subr.mxu0 0.0
        %483 = vmatpush1.msra.mxu0 0.0
        %484 = vmatprep.subr.mxu0 0.0
        %485 = vmatpush1.msra.mxu0 0.0
        %486 = vmatprep.subr.mxu0 0.0
        %487 = vmatpush1.msra.mxu0 0.0
        %488 = vmatprep.subr.mxu0 0.0
        %489 = vmatpush1.msra.mxu0 0.0
        %490 = vmatprep.subr.mxu0 0.0
        %491 = vmatpush1.msra.mxu0 0.0
        %492 = vmatprep.subr.mxu0 0.0
        %493 = vmatpush1.msra.mxu0 0.0
        %494 = vmatprep.subr.mxu0 0.0
        %495 = vmatpush1.msra.mxu0 0.0
        %496 = vmatprep.subr.mxu0 0.0
        %497 = vmatpush1.msra.mxu0 0.0
        %498 = vmatprep.subr.mxu0 0.0
        %499 = vmatpush1.msra.mxu0 0.0
        %500 = vmatprep.subr.mxu0 0.0
        %501 = vmatpush1.msra.mxu0 0.0
        %502 = vmatprep.subr.mxu0 0.0
        %503 = vmatpush1.msra.mxu0 0.0
        %504 = vmatprep.subr.mxu0 0.0
        %505 = vmatpush1.msra.mxu0 0.0
        %506 = vmatprep.subr.mxu0 0.0
        %507 = vmatpush1.msra.mxu0 0.0
        %508 = vmatprep.subr.mxu0 0.0
        %509 = vmatpush1.msra.mxu0 0.0
        %510 = vmatprep.subr.mxu0 0.0
        %511 = vmatpush1.msra.mxu0 0.0
        %512 = vmatprep.subr.mxu0 0.0
        %513 = vmatpush1.msra.mxu0 0.0
        %514 = vmatprep.subr.mxu0 0.0
        %515 = vmatpush1.msra.mxu0 0.0
        %516 = vmatprep.subr.mxu0 0.0
        %517 = vmatpush1.msra.mxu0 0.0
        %518 = vmatprep.mubr.f32.mxu0 0.0
        %519 = vmatmul.mubr.f32.gmra.mrb[0].mxu0 %v311
        %v520 = vpop.f32.mrb[0].mxu0
        %v521 = vadd.f32 0.0, %v520
        %v522 = vpop.f32.mrb[0].mxu0
        %523 = vmatprep.mubr.f32.mxu0 0.0
        %524 = vmatmul.mubr.f32.gmra.mrb[0].mxu0 %v314
        %v525 = vpop.f32.mrb[0].mxu0
        %v526 = vadd.f32 0.0, %v525
        %v527 = vpop.f32.mrb[0].mxu0
        %528 = vmatprep.mubr.f32.mxu0 0.0
        %529 = vmatmul.mubr.f32.gmra.mrb[0].mxu0 %v317
        %v530 = vpop.f32.mrb[0].mxu0
        %v531 = vadd.f32 0.0, %v530
        %v532 = vpop.f32.mrb[0].mxu0
        %533 = vmatprep.mubr.f32.mxu0 0.0
        %534 = vmatmul.mubr.f32.gmra.mrb[0].mxu0 %v320
        %v535 = vpop.f32.mrb[0].mxu0
        %v536 = vadd.f32 0.0, %v535
        %v537 = vpop.f32.mrb[0].mxu0
        %538 = vmatprep.mubr.f32.mxu0 0.0
        %539 = vmatmul.mubr.f32.gmra.mrb[0].mxu0 %v323
        %v540 = vpop.f32.mrb[0].mxu0
        %v541 = vadd.f32 0.0, %v540
        %v542 = vpop.f32.mrb[0].mxu0
        %543 = vmatprep.mubr.f32.mxu0 0.0
        %544 = vmatmul.mubr.f32.gmra.mrb[0].mxu0 %v326
        %v545 = vpop.f32.mrb[0].mxu0
        %v546 = vadd.f32 0.0, %v545
        %v547 = vpop.f32.mrb[0].mxu0
        %548 = vmatprep.mubr.f32.mxu0 0.0
        %549 = vmatmul.mubr.f32.gmra.mrb[0].mxu0 %v329
        %v550 = vpop.f32.mrb[0].mxu0
        %v551 = vadd.f32 0.0, %v550
        %v552 = vpop.f32.mrb[0].mxu0
        %553 = vmatprep.mubr.f32.mxu0 0.0
        %554 = vmatmul.mubr.f32.gmra.mrb[0].mxu0 %v332
        %v555 = vpop.f32.mrb[0].mxu0
        %v556 = vadd.f32 0.0, %v555
        %v557 = vpop.f32.mrb[0].mxu0
        %558 = vdwg.mxu0
        %v559 = vld [vmem:[%s269] sm:$0xff]
        %v560 = vld [vmem:[%s269 + $0x8] sm:$0xff]
        %v561 = vld [vmem:[%s269 + $0x10] sm:$0xff]
        %v562 = vld [vmem:[%s269 + $0x18] sm:$0xff]
        %v563 = vld [vmem:[%s269 + $0x20] sm:$0xff]
        %v564 = vld [vmem:[%s269 + $0x28] sm:$0xff]
        %v565 = vld [vmem:[%s269 + $0x30] sm:$0xff]
        %v566 = vld [vmem:[%s269 + $0x38] sm:$0xff]
        %s567 = scalar_lea.vmem %s269, 64
        %v568 = vld [vmem:[%s567] sm:$0xff]
        %v569 = vld [vmem:[%s567 + $0x8] sm:$0xff]
        %v570 = vld [vmem:[%s567 + $0x10] sm:$0xff]
        %v571 = vld [vmem:[%s567 + $0x18] sm:$0xff]
        %v572 = vld [vmem:[%s567 + $0x20] sm:$0xff]
        %v573 = vld [vmem:[%s567 + $0x28] sm:$0xff]
        %v574 = vld [vmem:[%s567 + $0x30] sm:$0xff]
        %v575 = vld [vmem:[%s567 + $0x38] sm:$0xff]
        %s576 = scalar_lea.vmem %s269, 128
        %v577 = vld [vmem:[%s576] sm:$0xff]
        %v578 = vld [vmem:[%s576 + $0x8] sm:$0xff]
        %v579 = vld [vmem:[%s576 + $0x10] sm:$0xff]
        %v580 = vld [vmem:[%s576 + $0x18] sm:$0xff]
        %v581 = vld [vmem:[%s576 + $0x20] sm:$0xff]
        %v582 = vld [vmem:[%s576 + $0x28] sm:$0xff]
        %v583 = vld [vmem:[%s576 + $0x30] sm:$0xff]
        %v584 = vld [vmem:[%s576 + $0x38] sm:$0xff]
        %s585 = sld [smem:[#allocation2]]
        %v586 = vstv %s585
        %v587 = vmul.f32 %v586, %v559
        %v588 = vmul.f32 %v586, %v560
        %v589 = vmul.f32 %v586, %v561
        %v590 = vmul.f32 %v586, %v562
        %v591 = vmul.f32 %v586, %v563
        %v592 = vmul.f32 %v586, %v564
        %v593 = vmul.f32 %v586, %v565
        %v594 = vmul.f32 %v586, %v566
        %s595 = sld [smem:[#allocation2 + $0x1]]
        %v596 = vstv %s595
        %v597 = vmul.f32 %v596, %v568
        %v598 = vmul.f32 %v596, %v569
        %v599 = vmul.f32 %v596, %v570
        %v600 = vmul.f32 %v596, %v571
        %v601 = vmul.f32 %v596, %v572
        %v602 = vmul.f32 %v596, %v573
        %v603 = vmul.f32 %v596, %v574
        %v604 = vmul.f32 %v596, %v575
        %v605 = vadd.f32 %v587, %v597
        %v606 = vadd.f32 %v588, %v598
        %v607 = vadd.f32 %v589, %v599
        %v608 = vadd.f32 %v590, %v600
        %v609 = vadd.f32 %v591, %v601
        %v610 = vadd.f32 %v592, %v602
        %v611 = vadd.f32 %v593, %v603
        %v612 = vadd.f32 %v594, %v604
        %s613 = sld [smem:[#allocation2 + $0x2]]
        %v614 = vstv %s613
        %v615 = vmul.f32 %v614, %v577
        %v616 = vmul.f32 %v614, %v578
        %v617 = vmul.f32 %v614, %v579
        %v618 = vmul.f32 %v614, %v580
        %v619 = vmul.f32 %v614, %v581
        %v620 = vmul.f32 %v614, %v582
        %v621 = vmul.f32 %v614, %v583
        %v622 = vmul.f32 %v614, %v584
        %v623 = vadd.f32 %v605, %v615
        %v624 = vadd.f32 %v606, %v616
        %v625 = vadd.f32 %v607, %v617
        %v626 = vadd.f32 %v608, %v618
        %v627 = vadd.f32 %v609, %v619
        %v628 = vadd.f32 %v610, %v620
        %v629 = vadd.f32 %v611, %v621
        %v630 = vadd.f32 %v612, %v622
        %v631 = vadd.f32 %v623, %v408
        %v632 = vadd.f32 %v624, %v414
        %v633 = vadd.f32 %v625, %v420
        %v634 = vadd.f32 %v626, %v426
        %v635 = vadd.f32 %v627, %v432
        %v636 = vadd.f32 %v628, %v438
        %v637 = vadd.f32 %v629, %v444
        %v638 = vadd.f32 %v630, %v450
        %639 = vst [vmem:[%s260] sm:$0xff] %v631
        %640 = vst [vmem:[%s260 + $0x8] sm:$0xff] %v632
        %641 = vst [vmem:[%s260 + $0x10] sm:$0xff] %v633
        %642 = vst [vmem:[%s260 + $0x18] sm:$0xff] %v634
        %643 = vst [vmem:[%s260 + $0x20] sm:$0xff] %v635
        %644 = vst [vmem:[%s260 + $0x28] sm:$0xff] %v636
        %645 = vst [vmem:[%s260 + $0x30] sm:$0xff] %v637
        %646 = vst [vmem:[%s260 + $0x38] sm:$0xff] %v638
        %s647 = sld [smem:[#allocation2 + $0x80]]
        %v648 = vstv %s647
        %v649 = vmul.f32 %v648, %v559
        %v650 = vmul.f32 %v648, %v560
        %v651 = vmul.f32 %v648, %v561
        %v652 = vmul.f32 %v648, %v562
        %v653 = vmul.f32 %v648, %v563
        %v654 = vmul.f32 %v648, %v564
        %v655 = vmul.f32 %v648, %v565
        %v656 = vmul.f32 %v648, %v566
        %s657 = sld [smem:[#allocation2 + $0x81]]
        %v658 = vstv %s657
        %v659 = vmul.f32 %v658, %v568
        %v660 = vmul.f32 %v658, %v569
        %v661 = vmul.f32 %v658, %v570
        %v662 = vmul.f32 %v658, %v571
        %v663 = vmul.f32 %v658, %v572
        %v664 = vmul.f32 %v658, %v573
        %v665 = vmul.f32 %v658, %v574
        %v666 = vmul.f32 %v658, %v575
        %v667 = vadd.f32 %v649, %v659
        %v668 = vadd.f32 %v650, %v660
        %v669 = vadd.f32 %v651, %v661
        %v670 = vadd.f32 %v652, %v662
        %v671 = vadd.f32 %v653, %v663
        %v672 = vadd.f32 %v654, %v664
        %v673 = vadd.f32 %v655, %v665
        %v674 = vadd.f32 %v656, %v666
        %s675 = sld [smem:[#allocation2 + $0x82]]
        %v676 = vstv %s675
        %v677 = vmul.f32 %v676, %v577
        %v678 = vmul.f32 %v676, %v578
        %v679 = vmul.f32 %v676, %v579
        %v680 = vmul.f32 %v676, %v580
        %v681 = vmul.f32 %v676, %v581
        %v682 = vmul.f32 %v676, %v582
        %v683 = vmul.f32 %v676, %v583
        %v684 = vmul.f32 %v676, %v584
        %v685 = vadd.f32 %v667, %v677
        %v686 = vadd.f32 %v668, %v678
        %v687 = vadd.f32 %v669, %v679
        %v688 = vadd.f32 %v670, %v680
        %v689 = vadd.f32 %v671, %v681
        %v690 = vadd.f32 %v672, %v682
        %v691 = vadd.f32 %v673, %v683
        %v692 = vadd.f32 %v674, %v684
        %v693 = vadd.f32 %v685, %v410
        %v694 = vadd.f32 %v686, %v416
        %v695 = vadd.f32 %v687, %v422
        %v696 = vadd.f32 %v688, %v428
        %v697 = vadd.f32 %v689, %v434
        %v698 = vadd.f32 %v690, %v440
        %v699 = vadd.f32 %v691, %v446
        %v700 = vadd.f32 %v692, %v452
        %s701 = scalar_lea.vmem %s260, 64 [#allocation5]
        %702 = vst [vmem:[%s701] sm:$0xff] %v693
        %703 = vst [vmem:[%s701 + $0x8] sm:$0xff] %v694
        %704 = vst [vmem:[%s701 + $0x10] sm:$0xff] %v695
        %705 = vst [vmem:[%s701 + $0x18] sm:$0xff] %v696
        %706 = vst [vmem:[%s701 + $0x20] sm:$0xff] %v697
        %707 = vst [vmem:[%s701 + $0x28] sm:$0xff] %v698
        %708 = vst [vmem:[%s701 + $0x30] sm:$0xff] %v699
        %709 = vst [vmem:[%s701 + $0x38] sm:$0xff] %v700
        %s710 = sld [smem:[#allocation2 + $0x100]]
        %v711 = vstv %s710
        %v712 = vmul.f32 %v711, %v559
        %v713 = vmul.f32 %v711, %v560
        %v714 = vmul.f32 %v711, %v561
        %v715 = vmul.f32 %v711, %v562
        %v716 = vmul.f32 %v711, %v563
        %v717 = vmul.f32 %v711, %v564
        %v718 = vmul.f32 %v711, %v565
        %v719 = vmul.f32 %v711, %v566
        %s720 = sld [smem:[#allocation2 + $0x101]]
        %v721 = vstv %s720
        %v722 = vmul.f32 %v721, %v568
        %v723 = vmul.f32 %v721, %v569
        %v724 = vmul.f32 %v721, %v570
        %v725 = vmul.f32 %v721, %v571
        %v726 = vmul.f32 %v721, %v572
        %v727 = vmul.f32 %v721, %v573
        %v728 = vmul.f32 %v721, %v574
        %v729 = vmul.f32 %v721, %v575
        %v730 = vadd.f32 %v712, %v722
        %v731 = vadd.f32 %v713, %v723
        %v732 = vadd.f32 %v714, %v724
        %v733 = vadd.f32 %v715, %v725
        %v734 = vadd.f32 %v716, %v726
        %v735 = vadd.f32 %v717, %v727
        %v736 = vadd.f32 %v718, %v728
        %v737 = vadd.f32 %v719, %v729
        %s738 = sld [smem:[#allocation2 + $0x102]]
        %v739 = vstv %s738
        %v740 = vmul.f32 %v739, %v577
        %v741 = vmul.f32 %v739, %v578
        %v742 = vmul.f32 %v739, %v579
        %v743 = vmul.f32 %v739, %v580
        %v744 = vmul.f32 %v739, %v581
        %v745 = vmul.f32 %v739, %v582
        %v746 = vmul.f32 %v739, %v583
        %v747 = vmul.f32 %v739, %v584
        %v748 = vadd.f32 %v730, %v740
        %v749 = vadd.f32 %v731, %v741
        %v750 = vadd.f32 %v732, %v742
        %v751 = vadd.f32 %v733, %v743
        %v752 = vadd.f32 %v734, %v744
        %v753 = vadd.f32 %v735, %v745
        %v754 = vadd.f32 %v736, %v746
        %v755 = vadd.f32 %v737, %v747
        %v756 = vadd.f32 %v748, %v521
        %v757 = vadd.f32 %v749, %v526
        %v758 = vadd.f32 %v750, %v531
        %v759 = vadd.f32 %v751, %v536
        %v760 = vadd.f32 %v752, %v541
        %v761 = vadd.f32 %v753, %v546
        %v762 = vadd.f32 %v754, %v551
        %v763 = vadd.f32 %v755, %v556
        %s764 = scalar_lea.vmem %s260, 128 [#allocation5]
        %765 = vst [vmem:[%s764] sm:$0xff] %v756
        %766 = vst [vmem:[%s764 + $0x8] sm:$0xff] %v757
        %767 = vst [vmem:[%s764 + $0x10] sm:$0xff] %v758
        %768 = vst [vmem:[%s764 + $0x18] sm:$0xff] %v759
        %769 = vst [vmem:[%s764 + $0x20] sm:$0xff] %v760
        %770 = vst [vmem:[%s764 + $0x28] sm:$0xff] %v761
        %771 = vst [vmem:[%s764 + $0x30] sm:$0xff] %v762
        %772 = vst [vmem:[%s764 + $0x38] sm:$0xff] %v763
        %s773 = sand.u32 %s142, 1
        %s774 = scalar_lea.sflag [#allocation3], %s773
        %s775 = sand.u32 %s142, 1
        %s776 = smul.addr %s775, 192
        %s777 = scalar_lea.vmem [#allocation5], %s776
        // Predicated region
        $region41: #{image_water_style_forward.3} parent=35 // pred_check
          %p778 = pneg %p152
        $region42: #{image_water_style_forward.3} parent=35 // pred_check_branch
          %780 = sbr.rel (%p778) target = $region44
        $region43: #{image_water_style_forward.3} parent=35 // pred_region
          %s781 = smul.u32 8, %s24
          %s783 = ssub.s32 3072, 3072
          %784 = vsyncadd %s774, %s783
          %s785 = smul.addr %s23, 24
          %s786 = sadd.s32 %s781, %s785
          %s787 = smul.addr %s786, 128
          %s788 = scalar_lea.hbm %s4, %s787
          %s789 = sshll.u32 %s777, 4
          %s790 = int_to_ptr.vmem [resolvable:$true] %s789
          %795 = dma.vmem_to_hbm [thread:$0]  %s790, 3072, %s788, %s774, 128, 128, 8
        $region44: #{image_water_style_forward.3} parent=35 // pred_fallthru
          _
      $region36: #{image_water_style_forward.3} parent=5 // pred_fallthru
        _
      %p796 = scmp.le.s32.totalorder 2, %s14
      // Predicated region
      $region45: #{image_water_style_forward.3} parent=5 // pred_check
        %p797 = pneg %p796
      $region46: #{image_water_style_forward.3} parent=5 // pred_check_branch
        %799 = sbr.rel (%p797) target = $region48
      $region47: #{image_water_style_forward.3} parent=5 // pred_region
        %s800 = ssub.s32 %s14, 2
        // Predicated region
        $region49: #{image_water_style_forward.3} parent=47 // pred_check
          %p801 = pneg %p158
        $region50: #{image_water_style_forward.3} parent=47 // pred_check_branch
          %803 = sbr.rel (%p801) target = $region52
        $region51: #{image_water_style_forward.3} parent=47 // pred_region
          %s804 = sand.u32 %s143, 1
          %s805 = scalar_lea.sflag [#allocation3], %s804
          %s806 = sand.u32 %s143, 1
          %s807 = smul.addr %s806, 192
          %s808 = scalar_lea.vmem [#allocation5], %s807
          %809 = dma.done %s805, 3072
        $region52: #{image_water_style_forward.3} parent=47 // pred_fallthru
          _
      $region48: #{image_water_style_forward.3} parent=5 // pred_fallthru
        _
    $region6: #{image_water_style_forward.3} parent=1 // loop_footer
      %s18 = sadd.s32 1, %s14
    $region7: #{image_water_style_forward.3} parent=1 // loop_footer_branch
      %13 = sbr.rel target = $region3
    $region8: #{image_water_style_forward.3} parent=1 // loop_exit
      _
    %810 = vsyncpa [#allocation3], 1
    %s811 = scalar_lea.sflag [#allocation3], 1
    %812 = vsyncpa %s811, 1
    %813 = vsyncpa [#allocation4], 1
    %s814 = scalar_lea.sflag [#allocation4], 1
    %815 = vsyncpa %s814, 1

// kernel: image_water_style_forward.2
$region0: #{image_water_style_forward.2}
  #allocation0 [shape = 'u32[]', space=smem, size = 0x4, offset = 0x4, fixed_abs, tag = 'smem constant byte address 0x4 - core index']
  #allocation1 [shape = 'u32[144,128]{1,0:T(1,128)}', space=vmem, size = 0x12000, scoped, tag = 'internal scratch']
  %s0 = inlined_call_operand.hbm [shape: f32[2,6,64,128], index: 0, kind: input, shape index: {}]
  %s1 = inlined_call_operand.vmem [shape: f32[2,64], index: 1, kind: input, shape index: {}]
  %s2 = inlined_call_operand.hbm [shape: f32[128,4], index: 2, kind: input, shape index: {}]
  %s3 = inlined_call_operand.vmem [shape: f32[2,3,2,4], index: 3, kind: output, shape index: {}]
  %s4 = sld [smem:[#allocation0]]
  $region57: #{image_water_style_forward.2} parent=0
    _
  %s6 = ssub.s32 1, %s4
  %s7 = scalar_select 0, %s6, %s4
  $region1: #{image_water_style_forward.2} parent=0
    #allocation2 [shape = 'u8[196608]{0}', space=vmem, size = 0x30000, scoped, tag = 'input window, operand 0']
    #allocation3 [shape = 's32[2]{0}', space=sflag, size = 0x8, scoped, tag = 'scoped memory for image_water_style_forward.2']
    #allocation4 [shape = 'u8[65536]{0}', space=vmem, size = 0x10000, scoped, tag = 'input window, operand 2, single buffered']
    #allocation5 [shape = 's32[1]{0}', space=sflag, size = 0x4, scoped, tag = 'scoped memory for image_water_style_forward.2']
    %8 = vsyncpa [#allocation3], 0
    %s9 = scalar_lea.sflag [#allocation3], 1
    %10 = vsyncpa %s9, 0
    %11 = vsyncpa [#allocation5], 0
    loop: start=0, step=1, limit=4
    $region2: #{image_water_style_forward.2} parent=1 // loop_pre_header
      _
    $region3: #{image_water_style_forward.2} parent=1 // loop_header
      %s13 = sphi 0, %s17
      %p14 = scmp.ge.s32.totalorder %s13, 4
      %s20 = sphi 0, %s32
      %s21 = sphi 0, %s28
      %s22 = sphi 0, %s20
      %s23 = sphi 0, %s21
      %s24 = sphi 0, %s22
      %s25 = sphi 0, %s23
      %s37 = sphi 0, %s39
      %s40 = sphi 0, %s37
      %s41 = sphi 0, %s40
      %s57 = sphi 0, %s41
      %s63 = sphi 0, %s65
      %s66 = sphi 0, %s63
      %s67 = sphi 0, %s66
      %s83 = sphi 0, %s67
      %s87 = sphi 0, %s87
      %s89 = sphi 0, %s87
      %s90 = sphi 0, %s89
      %s104 = sphi 0, %s90
      %s110 = sphi 0, %s112
      %s113 = sphi 0, %s110
      %s114 = sphi 0, %s113
      %s130 = sphi 0, %s114
    $region4: #{image_water_style_forward.2} parent=1 // loop_header_branch
      %16 = sbr.rel (%p14) target = $region8
    $region5: #{image_water_style_forward.2} parent=1 // loop_body
      %s18 = ssub.s32 %s13, 1
      %s19 = ssub.s32 %s13, 2
      %s26 = sadd.s32 1, %s21
      %p27 = scmp.ge.s32.totalorder %s26, 1
      %s28 = scalar_select %p27, 0, %s26
      %s29 = sadd.s32 1, %s20
      %s30 = scalar_select %p27, %s29, %s20
      %p31 = scmp.ge.s32.totalorder %s30, 2
      %s32 = scalar_select %p31, 0, %s30
      %s33 = ssub.s32 %s20, %s32
      %s34 = ssub.s32 %s21, %s28
      %s35 = sor.u32 %s33, %s34
      %p36 = scmp.eq.s32.totalorder %s35, 0
      %s38 = sadd.s32 %s37, 1
      %s39 = scalar_select %p36, %s37, %s38
      %p42 = pneg %p36
      %p43 = scmp.eq.s32.totalorder %s13, 1
      %p44 = por %p42, %p43
      %p45 = scmp.ne.s32.totalorder %s37, %s40
      %p46 = scmp.eq.s32.totalorder %s13, 0
      %p47 = por %p45, %p46
      %p48 = scmp.ne.s32.totalorder %s37, %s40
      %p49 = scmp.eq.s32.totalorder %s18, 1
      %p50 = por %p48, %p49
      %p51 = scmp.ne.s32.totalorder %s40, %s41
      %p52 = scmp.eq.s32.totalorder %s18, 0
      %p53 = por %p51, %p52
      %p54 = scmp.ne.s32.totalorder %s40, %s41
      %p55 = scmp.eq.s32.totalorder %s19, 1
      %p56 = por %p54, %p55
      %p58 = scmp.ne.s32.totalorder %s41, %s57
      %p59 = scmp.eq.s32.totalorder %s19, 0
      %p60 = por %p58, %p59
      %s61 = ssub.s32 %s21, %s28
      %p62 = scmp.eq.s32.totalorder %s61, 0
      %s64 = sadd.s32 %s63, 1
      %s65 = scalar_select %p62, %s63, %s64
      %p68 = pneg %p62
      %p69 = scmp.eq.s32.totalorder %s13, 1
      %p70 = por %p68, %p69
      %p71 = scmp.ne.s32.totalorder %s63, %s66
      %p72 = scmp.eq.s32.totalorder %s13, 0
      %p73 = por %p71, %p72
      %p74 = scmp.ne.s32.totalorder %s63, %s66
      %p75 = scmp.eq.s32.totalorder %s18, 1
      %p76 = por %p74, %p75
      %p77 = scmp.ne.s32.totalorder %s66, %s67
      %p78 = scmp.eq.s32.totalorder %s18, 0
      %p79 = por %p77, %p78
      %p80 = scmp.ne.s32.totalorder %s66, %s67
      %p81 = scmp.eq.s32.totalorder %s19, 1
      %p82 = por %p80, %p81
      %p84 = scmp.ne.s32.totalorder %s67, %s83
      %p85 = scmp.eq.s32.totalorder %s19, 0
      %p86 = por %p84, %p85
      %s88 = sadd.s32 %s87, 1
      %p91 = scmp.eq.s32.totalorder %s13, 1
      %p92 = scmp.ne.s32.totalorder %s87, %s89
      %p93 = scmp.eq.s32.totalorder %s13, 0
      %p94 = por %p92, %p93
      %p95 = scmp.ne.s32.totalorder %s87, %s89
      %p96 = scmp.eq.s32.totalorder %s18, 1
      %p97 = por %p95, %p96
      %p98 = scmp.ne.s32.totalorder %s89, %s90
      %p99 = scmp.eq.s32.totalorder %s18, 0
      %p100 = por %p98, %p99
      %p101 = scmp.ne.s32.totalorder %s89, %s90
      %p102 = scmp.eq.s32.totalorder %s19, 1
      %p103 = por %p101, %p102
      %p105 = scmp.ne.s32.totalorder %s90, %s104
      %p106 = scmp.eq.s32.totalorder %s19, 0
      %p107 = por %p105, %p106
      %s108 = ssub.s32 %s20, %s32
      %p109 = scmp.eq.s32.totalorder %s108, 0
      %s111 = sadd.s32 %s110, 1
      %s112 = scalar_select %p109, %s110, %s111
      %p115 = pneg %p109
      %p116 = scmp.eq.s32.totalorder %s13, 1
      %p117 = por %p115, %p116
      %p118 = scmp.ne.s32.totalorder %s110, %s113
      %p119 = scmp.eq.s32.totalorder %s13, 0
      %p120 = por %p118, %p119
      %p121 = scmp.ne.s32.totalorder %s110, %s113
      %p122 = scmp.eq.s32.totalorder %s18, 1
      %p123 = por %p121, %p122
      %p124 = scmp.ne.s32.totalorder %s113, %s114
      %p125 = scmp.eq.s32.totalorder %s18, 0
      %p126 = por %p124, %p125
      %p127 = scmp.ne.s32.totalorder %s113, %s114
      %p128 = scmp.eq.s32.totalorder %s19, 1
      %p129 = por %p127, %p128
      %p131 = scmp.ne.s32.totalorder %s114, %s130
      %p132 = scmp.eq.s32.totalorder %s19, 0
      %p133 = por %p131, %p132
      %p134 = scmp.le.s32.totalorder 1, %s13
      %p135 = scmp.lt.s32.totalorder %s13, 3
      %p136 = pnand %p134, %p135
      %p137 = pneg %p136
      // Predicated region
      $region9: #{image_water_style_forward.2} parent=5 // pred_check
        _
      $region10: #{image_water_style_forward.2} parent=5 // pred_check_branch
        %139 = sbr.rel (%p136) target = $region12
      $region11: #{image_water_style_forward.2} parent=5 // pred_region
        %s140 = ssub.s32 %s13, 1
        // Predicated region
        $region13: #{image_water_style_forward.2} parent=11 // pred_check
          %p141 = pneg %p79
        $region14: #{image_water_style_forward.2} parent=11 // pred_check_branch
          %143 = sbr.rel (%p141) target = $region16
        $region15: #{image_water_style_forward.2} parent=11 // pred_region
          %p144 = scmp.lt.s32.totalorder %s23, 0
          %s145 = scalar_select %p144, %s23, 0
          %s146 = smul.addr %s145, 2
          %s147 = scalar_lea.vmem %s1, %s146
        $region16: #{image_water_style_forward.2} parent=11 // pred_fallthru
          _
        // Predicated region
        $region17: #{image_water_style_forward.2} parent=11 // pred_check
          %p148 = pneg %p100
        $region18: #{image_water_style_forward.2} parent=11 // pred_check_branch
          %150 = sbr.rel (%p148) target = $region20
        $region19: #{image_water_style_forward.2} parent=11 // pred_region
          %s152 = ssub.s32 2048, 2048
          %153 = vsyncadd [#allocation5], %s152
          %s154 = sshll.u32 [#allocation4], 4
          %s155 = int_to_ptr.vmem [resolvable:$true] %s154
          %160 = dma.hbm_to_vmem [thread:$0]  %s2, 2048, %s155, [#allocation5], 128, 128, 8
        $region20: #{image_water_style_forward.2} parent=11 // pred_fallthru
          _
      $region12: #{image_water_style_forward.2} parent=5 // pred_fallthru
        _
      %p161 = scmp.lt.s32.totalorder %s13, 2
      // Predicated region
      $region21: #{image_water_style_forward.2} parent=5 // pred_check
        %p162 = pneg %p161
      $region22: #{image_water_style_forward.2} parent=5 // pred_check_branch
        %164 = sbr.rel (%p162) target = $region24
      $region23: #{image_water_style_forward.2} parent=5 // pred_region
        // Predicated region
        $region25: #{image_water_style_forward.2} parent=23 // pred_check
          %p165 = pneg %p47
        $region26: #{image_water_style_forward.2} parent=23 // pred_check_branch
          %167 = sbr.rel (%p165) target = $region28
        $region27: #{image_water_style_forward.2} parent=23 // pred_region
          %s168 = sand.u32 %s37, 1
          %s169 = scalar_lea.sflag [#allocation3], %s168
          %s170 = sand.u32 %s37, 1
          %s171 = smul.addr %s170, 192
          %s172 = scalar_lea.vmem [#allocation2], %s171
          %s173 = smul.u32 8, %s21
          %s175 = ssub.s32 3072, 3072
          %176 = vsyncadd %s169, %s175
          %s177 = sadd.s32 %s173, 24
          %s178 = smul.addr %s20, 48
          %s179 = sadd.s32 %s177, %s178
          %s180 = smul.addr %s179, 128
          %s181 = scalar_lea.hbm %s0, %s180
          %s182 = sshll.u32 %s172, 4
          %s183 = int_to_ptr.vmem [resolvable:$true] %s182
          %188 = dma.hbm_to_vmem [thread:$0]  %s181, 3072, %s183, %s169, 128, 128, 8
        $region28: #{image_water_style_forward.2} parent=23 // pred_fallthru
          _
      $region24: #{image_water_style_forward.2} parent=5 // pred_fallthru
        _
      %p189 = scmp.le.s32.totalorder 1, %s13
      %p190 = scmp.lt.s32.totalorder %s13, 3
      %p191 = pnand %p189, %p190
      %p192 = pneg %p191
      // Predicated region
      $region29: #{image_water_style_forward.2} parent=5 // pred_check
        _
      $region30: #{image_water_style_forward.2} parent=5 // pred_check_branch
        %194 = sbr.rel (%p191) target = $region32
      $region31: #{image_water_style_forward.2} parent=5 // pred_region
        %s195 = ssub.s32 %s13, 1
        %s196 = sand.u32 %s40, 1
        %s197 = scalar_lea.sflag [#allocation3], %s196
        %s198 = sand.u32 %s40, 1
        %s199 = smul.addr %s198, 192
        %s200 = scalar_lea.vmem [#allocation2], %s199
        // Predicated region
        $region33: #{image_water_style_forward.2} parent=31 // pred_check
          %p201 = pneg %p53
        $region34: #{image_water_style_forward.2} parent=31 // pred_check_branch
          %203 = sbr.rel (%p201) target = $region36
        $region35: #{image_water_style_forward.2} parent=31 // pred_region
          %204 = dma.done %s197, 3072
        $region36: #{image_water_style_forward.2} parent=31 // pred_fallthru
          _
        // Predicated region
        $region37: #{image_water_style_forward.2} parent=31 // pred_check
          %p205 = pneg %p100
        $region38: #{image_water_style_forward.2} parent=31 // pred_check_branch
          %207 = sbr.rel (%p205) target = $region40
        $region39: #{image_water_style_forward.2} parent=31 // pred_region
          %208 = dma.done [#allocation5], 2048
        $region40: #{image_water_style_forward.2} parent=31 // pred_fallthru
          _
        %s209 = sand.u32 %s40, 1
        %s210 = scalar_lea.sflag [#allocation3], %s209
        %s211 = sand.u32 %s40, 1
        %s212 = smul.addr %s211, 192
        %s213 = scalar_lea.vmem [#allocation2], %s212
        %p214 = pneg %p53
        %p215 = pneg %p50
        %p216 = scmp.lt.s32.totalorder %s23, 0
        %s217 = scalar_select %p216, %s23, 0
        %s218 = smul.addr %s217, 2
        %s219 = scalar_lea.vmem %s1, %s218
        %p220 = pneg %p79
        %p221 = pneg %p76
        %p222 = pneg %p100
        %p223 = pneg %p97
        %p224 = pneg %p126
        %p225 = pneg %p123
        %p226 = scmp.lt.s32.totalorder %s22, 1
        %s227 = scalar_select %p226, %s22, 1
        %s228 = smul.addr %s227, 3
        %s229 = smul.addr %s228, 2
        %s230 = scalar_lea.vmem %s3, %s229
        %s231 = smul.u32 8, %s23
        %p232 = scmp.lt.s32.totalorder %s23, 0
        %s233 = scalar_select %p232, %s23, 0
        %s234 = smul.addr %s233, 2
        %s235 = scalar_lea.vmem %s1, %s234
        %p236 = scmp.lt.s32.totalorder %s22, 1
        %s237 = scalar_select %p236, %s22, 1
        %s238 = smul.addr %s237, 3
        %s239 = smul.addr %s238, 2
        %s240 = scalar_lea.vmem %s3, %s239
        %p241 = scmp.eq.s32.totalorder %s23, 0
        // Predicated region
        $region41: #{image_water_style_forward.2} parent=31 // pred_check
          %p242 = pneg %p241
        $region42: #{image_water_style_forward.2} parent=31 // pred_check_branch
          %244 = sbr.rel (%p242) target = $region44
        $region43: #{image_water_style_forward.2} parent=31 // pred_region
          %vm245 = vcmask 25600
          %246 = vst.msk [vmem:[%s240] sm:$0x3] %vm245, 0.0
          %247 = vst.msk [vmem:[%s240 + $0x2] sm:$0x3] %vm245, 0.0
          %248 = vst.msk [vmem:[%s240 + $0x4] sm:$0x3] %vm245, 0.0
        $region44: #{image_water_style_forward.2} parent=31 // pred_fallthru
          _
        %v249 = vld [vmem:[%s235] sm:$0x3]
        %v250 = vld [vmem:[#allocation4] sm:$0xff]
        %v251 = vld [vmem:[#allocation4 + $0x8] sm:$0xff]
        %v252 = vld [vmem:[#allocation4 + $0x10] sm:$0xff]
        %v253 = vld [vmem:[#allocation4 + $0x18] sm:$0xff]
        %v254 = vld [vmem:[#allocation4 + $0x20] sm:$0xff]
        %v255 = vld [vmem:[#allocation4 + $0x28] sm:$0xff]
        %v256 = vld [vmem:[#allocation4 + $0x30] sm:$0xff]
        %v257 = vld [vmem:[#allocation4 + $0x38] sm:$0xff]
        %v258 = vld [vmem:[#allocation4 + $0x40] sm:$0xff]
        %v259 = vld [vmem:[#allocation4 + $0x48] sm:$0xff]
        %v260 = vld [vmem:[#allocation4 + $0x50] sm:$0xff]
        %v261 = vld [vmem:[#allocation4 + $0x58] sm:$0xff]
        %v262 = vld [vmem:[#allocation4 + $0x60] sm:$0xff]
        %v263 = vld [vmem:[#allocation4 + $0x68] sm:$0xff]
        %v264 = vld [vmem:[#allocation4 + $0x70] sm:$0xff]
        %v265 = vld [vmem:[#allocation4 + $0x78] sm:$0xff]
        %v266 = vld [vmem:[%s200] sm:$0xff]
        %v267 = vld [vmem:[%s200 + $0x8] sm:$0xff]
        %v268 = vld [vmem:[%s200 + $0x10] sm:$0xff]
        %v269 = vld [vmem:[%s200 + $0x18] sm:$0xff]
        %v270 = vld [vmem:[%s200 + $0x20] sm:$0xff]
        %v271 = vld [vmem:[%s200 + $0x28] sm:$0xff]
        %v272 = vld [vmem:[%s200 + $0x30] sm:$0xff]
        %v273 = vld [vmem:[%s200 + $0x38] sm:$0xff]
        %vm274 = vcmask 523264
        %v276 = vsel %vm274, %v249, 0
        %278 = vmatprep.subr.mxu0 0.0
        %279 = vmatpush1.msra.mxu0 %v266
        %280 = vmatprep.subr.mxu0 0.0
        %281 = vmatpush1.msra.mxu0 %v267
        %282 = vmatprep.subr.mxu0 0.0
        %283 = vmatpush1.msra.mxu0 %v268
        %284 = vmatprep.subr.mxu0 0.0
        %285 = vmatpush1.msra.mxu0 %v269
        %286 = vmatprep.subr.mxu0 0.0
        %287 = vmatpush1.msra.mxu0 %v270
        %288 = vmatprep.subr.mxu0 0.0
        %289 = vmatpush1.msra.mxu0 %v271
        %290 = vmatprep.subr.mxu0 0.0
        %291 = vmatpush1.msra.mxu0 %v272
        %292 = vmatprep.subr.mxu0 0.0
        %293 = vmatpush1.msra.mxu0 %v273
        %294 = vmatprep.subr.mxu0 0.0
        %295 = vmatpush1.msra.mxu0 0.0
        %296 = vmatprep.subr.mxu0 0.0
        %297 = vmatpush1.msra.mxu0 0.0
        %298 = vmatprep.subr.mxu0 0.0
        %299 = vmatpush1.msra.mxu0 0.0
        %300 = vmatprep.subr.mxu0 0.0
        %301 = vmatpush1.msra.mxu0 0.0
        %302 = vmatprep.subr.mxu0 0.0
        %303 = vmatpush1.msra.mxu0 0.0
        %304 = vmatprep.subr.mxu0 0.0
        %305 = vmatpush1.msra.mxu0 0.0
        %306 = vmatprep.subr.mxu0 0.0
        %307 = vmatpush1.msra.mxu0 0.0
        %308 = vmatprep.subr.mxu0 0.0
        %309 = vmatpush1.msra.mxu0 0.0
        %310 = vmatprep.subr.mxu0 0.0
        %311 = vmatpush1.msra.mxu0 0.0
        %312 = vmatprep.subr.mxu0 0.0
        %313 = vmatpush1.msra.mxu0 0.0
        %314 = vmatprep.subr.mxu0 0.0
        %315 = vmatpush1.msra.mxu0 0.0
        %316 = vmatprep.subr.mxu0 0.0
        %317 = vmatpush1.msra.mxu0 0.0
        %318 = vmatprep.subr.mxu0 0.0
        %319 = vmatpush1.msra.mxu0 0.0
        %320 = vmatprep.subr.mxu0 0.0
        %321 = vmatpush1.msra.mxu0 0.0
        %322 = vmatprep.subr.mxu0 0.0
        %323 = vmatpush1.msra.mxu0 0.0
        %324 = vmatprep.subr.mxu0 0.0
        %325 = vmatpush1.msra.mxu0 0.0
        %326 = vmatprep.subr.mxu0 0.0
        %327 = vmatpush1.msra.mxu0 0.0
        %328 = vmatprep.subr.mxu0 0.0
        %329 = vmatpush1.msra.mxu0 0.0
        %330 = vmatprep.subr.mxu0 0.0
        %331 = vmatpush1.msra.mxu0 0.0
        %332 = vmatprep.subr.mxu0 0.0
        %333 = vmatpush1.msra.mxu0 0.0
        %334 = vmatprep.subr.mxu0 0.0
        %335 = vmatpush1.msra.mxu0 0.0
        %336 = vmatprep.subr.mxu0 0.0
        %337 = vmatpush1.msra.mxu0 0.0
        %338 = vmatprep.subr.mxu0 0.0
        %339 = vmatpush1.msra.mxu0 0.0
        %340 = vmatprep.subr.mxu0 0.0
        %341 = vmatpush1.msra.mxu0 0.0
        %342 = vmatprep.mubr.f32.mxu0 0.0
        %343 = vmatmul.mubr.f32.gmra.mrb[0].mxu0 %v276
        %v344 = vpop.f32.mrb[0].mxu0
        %v345 = vadd.f32 0.0, %v344
        %v346 = vpop.f32.mrb[0].mxu0
        %347 = vdwg.mxu0
        %348 = vmatprep.subr.mxu0 0.0
        %349 = vmatpush1.msra.mxu0 %v250
        %350 = vmatprep.subr.mxu0 0.0
        %351 = vmatpush1.msra.mxu0 %v251
        %352 = vmatprep.subr.mxu0 0.0
        %353 = vmatpush1.msra.mxu0 %v252
        %354 = vmatprep.subr.mxu0 0.0
        %355 = vmatpush1.msra.mxu0 %v253
        %356 = vmatprep.subr.mxu0 0.0
        %357 = vmatpush1.msra.mxu0 %v254
        %358 = vmatprep.subr.mxu0 0.0
        %359 = vmatpush1.msra.mxu0 %v255
        %360 = vmatprep.subr.mxu0 0.0
        %361 = vmatpush1.msra.mxu0 %v256
        %362 = vmatprep.subr.mxu0 0.0
        %363 = vmatpush1.msra.mxu0 %v257
        %364 = vmatprep.subr.mxu0 0.0
        %365 = vmatpush1.msra.mxu0 %v258
        %366 = vmatprep.subr.mxu0 0.0
        %367 = vmatpush1.msra.mxu0 %v259
        %368 = vmatprep.subr.mxu0 0.0
        %369 = vmatpush1.msra.mxu0 %v260
        %370 = vmatprep.subr.mxu0 0.0
        %371 = vmatpush1.msra.mxu0 %v261
        %372 = vmatprep.subr.mxu0 0.0
        %373 = vmatpush1.msra.mxu0 %v262
        %374 = vmatprep.subr.mxu0 0.0
        %375 = vmatpush1.msra.mxu0 %v263
        %376 = vmatprep.subr.mxu0 0.0
        %377 = vmatpush1.msra.mxu0 %v264
        %378 = vmatprep.subr.mxu0 0.0
        %379 = vmatpush1.msra.mxu0 %v265
        %380 = vmatprep.subr.mxu0 0.0
        %381 = vmatpush1.msra.mxu0 0.0
        %382 = vmatprep.subr.mxu0 0.0
        %383 = vmatpush1.msra.mxu0 0.0
        %384 = vmatprep.subr.mxu0 0.0
        %385 = vmatpush1.msra.mxu0 0.0
        %386 = vmatprep.subr.mxu0 0.0
        %387 = vmatpush1.msra.mxu0 0.0
        %388 = vmatprep.subr.mxu0 0.0
        %389 = vmatpush1.msra.mxu0 0.0
        %390 = vmatprep.subr.mxu0 0.0
        %391 = vmatpush1.msra.mxu0 0.0
        %392 = vmatprep.subr.mxu0 0.0
        %393 = vmatpush1.msra.mxu0 0.0
        %394 = vmatprep.subr.mxu0 0.0
        %395 = vmatpush1.msra.mxu0 0.0
        %396 = vmatprep.subr.mxu0 0.0
        %397 = vmatpush1.msra.mxu0 0.0
        %398 = vmatprep.subr.mxu0 0.0
        %399 = vmatpush1.msra.mxu0 0.0
        %400 = vmatprep.subr.mxu0 0.0
        %401 = vmatpush1.msra.mxu0 0.0
        %402 = vmatprep.subr.mxu0 0.0
        %403 = vmatpush1.msra.mxu0 0.0
        %404 = vmatprep.subr.mxu0 0.0
        %405 = vmatpush1.msra.mxu0 0.0
        %406 = vmatprep.subr.mxu0 0.0
        %407 = vmatpush1.msra.mxu0 0.0
        %408 = vmatprep.subr.mxu0 0.0
        %409 = vmatpush1.msra.mxu0 0.0
        %410 = vmatprep.subr.mxu0 0.0
        %411 = vmatpush1.msra.mxu0 0.0
        %412 = vmatprep.mubr.f32.mxu0 0.0
        %413 = vmatmul.mubr.f32.gmra.mrb[0].mxu0 %v345
        %v414 = vpop.f32.mrb[0].mxu0
        %v415 = vadd.f32 0.0, %v414
        %v416 = vpop.f32.mrb[0].mxu0
        %417 = vdwg.mxu0
        %v418 = vld [vmem:[%s240] sm:$0x3]
        %v419 = vadd.f32 %v418, %v415
        %vm420 = vcmask 25600
        %421 = vst.msk [vmem:[%s240] sm:$0x3] %vm420, %v419
        %s422 = scalar_lea.vmem %s200, 64 [#allocation2]
        %v423 = vld [vmem:[%s422] sm:$0xff]
        %v424 = vld [vmem:[%s422 + $0x8] sm:$0xff]
        %v425 = vld [vmem:[%s422 + $0x10] sm:$0xff]
        %v426 = vld [vmem:[%s422 + $0x18] sm:$0xff]
        %v427 = vld [vmem:[%s422 + $0x20] sm:$0xff]
        %v428 = vld [vmem:[%s422 + $0x28] sm:$0xff]
        %v429 = vld [vmem:[%s422 + $0x30] sm:$0xff]
        %v430 = vld [vmem:[%s422 + $0x38] sm:$0xff]
        %431 = vmatprep.subr.mxu0 0.0
        %432 = vmatpush1.msra.mxu0 %v423
        %433 = vmatprep.subr.mxu0 0.0
        %434 = vmatpush1.msra.mxu0 %v424
        %435 = vmatprep.subr.mxu0 0.0
        %436 = vmatpush1.msra.mxu0 %v425
        %437 = vmatprep.subr.mxu0 0.0
        %438 = vmatpush1.msra.mxu0 %v426
        %439 = vmatprep.subr.mxu0 0.0
        %440 = vmatpush1.msra.mxu0 %v427
        %441 = vmatprep.subr.mxu0 0.0
        %442 = vmatpush1.msra.mxu0 %v428
        %443 = vmatprep.subr.mxu0 0.0
        %444 = vmatpush1.msra.mxu0 %v429
        %445 = vmatprep.subr.mxu0 0.0
        %446 = vmatpush1.msra.mxu0 %v430
        %447 = vmatprep.subr.mxu0 0.0
        %448 = vmatpush1.msra.mxu0 0.0
        %449 = vmatprep.subr.mxu0 0.0
        %450 = vmatpush1.msra.mxu0 0.0
        %451 = vmatprep.subr.mxu0 0.0
        %452 = vmatpush1.msra.mxu0 0.0
        %453 = vmatprep.subr.mxu0 0.0
        %454 = vmatpush1.msra.mxu0 0.0
        %455 = vmatprep.subr.mxu0 0.0
        %456 = vmatpush1.msra.mxu0 0.0
        %457 = vmatprep.subr.mxu0 0.0
        %458 = vmatpush1.msra.mxu0 0.0
        %459 = vmatprep.subr.mxu0 0.0
        %460 = vmatpush1.msra.mxu0 0.0
        %461 = vmatprep.subr.mxu0 0.0
        %462 = vmatpush1.msra.mxu0 0.0
        %463 = vmatprep.subr.mxu0 0.0
        %464 = vmatpush1.msra.mxu0 0.0
        %465 = vmatprep.subr.mxu0 0.0
        %466 = vmatpush1.msra.mxu0 0.0
        %467 = vmatprep.subr.mxu0 0.0
        %468 = vmatpush1.msra.mxu0 0.0
        %469 = vmatprep.subr.mxu0 0.0
        %470 = vmatpush1.msra.mxu0 0.0
        %471 = vmatprep.subr.mxu0 0.0
        %472 = vmatpush1.msra.mxu0 0.0
        %473 = vmatprep.subr.mxu0 0.0
        %474 = vmatpush1.msra.mxu0 0.0
        %475 = vmatprep.subr.mxu0 0.0
        %476 = vmatpush1.msra.mxu0 0.0
        %477 = vmatprep.subr.mxu0 0.0
        %478 = vmatpush1.msra.mxu0 0.0
        %479 = vmatprep.subr.mxu0 0.0
        %480 = vmatpush1.msra.mxu0 0.0
        %481 = vmatprep.subr.mxu0 0.0
        %482 = vmatpush1.msra.mxu0 0.0
        %483 = vmatprep.subr.mxu0 0.0
        %484 = vmatpush1.msra.mxu0 0.0
        %485 = vmatprep.subr.mxu0 0.0
        %486 = vmatpush1.msra.mxu0 0.0
        %487 = vmatprep.subr.mxu0 0.0
        %488 = vmatpush1.msra.mxu0 0.0
        %489 = vmatprep.subr.mxu0 0.0
        %490 = vmatpush1.msra.mxu0 0.0
        %491 = vmatprep.subr.mxu0 0.0
        %492 = vmatpush1.msra.mxu0 0.0
        %493 = vmatprep.subr.mxu0 0.0
        %494 = vmatpush1.msra.mxu0 0.0
        %495 = vmatprep.mubr.f32.mxu0 0.0
        %496 = vmatmul.mubr.f32.gmra.mrb[0].mxu0 %v276
        %v497 = vpop.f32.mrb[0].mxu0
        %v498 = vadd.f32 0.0, %v497
        %v499 = vpop.f32.mrb[0].mxu0
        %500 = vdwg.mxu0
        %501 = vmatprep.subr.mxu0 0.0
        %502 = vmatpush1.msra.mxu0 %v250
        %503 = vmatprep.subr.mxu0 0.0
        %504 = vmatpush1.msra.mxu0 %v251
        %505 = vmatprep.subr.mxu0 0.0
        %506 = vmatpush1.msra.mxu0 %v252
        %507 = vmatprep.subr.mxu0 0.0
        %508 = vmatpush1.msra.mxu0 %v253
        %509 = vmatprep.subr.mxu0 0.0
        %510 = vmatpush1.msra.mxu0 %v254
        %511 = vmatprep.subr.mxu0 0.0
        %512 = vmatpush1.msra.mxu0 %v255
        %513 = vmatprep.subr.mxu0 0.0
        %514 = vmatpush1.msra.mxu0 %v256
        %515 = vmatprep.subr.mxu0 0.0
        %516 = vmatpush1.msra.mxu0 %v257
        %517 = vmatprep.subr.mxu0 0.0
        %518 = vmatpush1.msra.mxu0 %v258
        %519 = vmatprep.subr.mxu0 0.0
        %520 = vmatpush1.msra.mxu0 %v259
        %521 = vmatprep.subr.mxu0 0.0
        %522 = vmatpush1.msra.mxu0 %v260
        %523 = vmatprep.subr.mxu0 0.0
        %524 = vmatpush1.msra.mxu0 %v261
        %525 = vmatprep.subr.mxu0 0.0
        %526 = vmatpush1.msra.mxu0 %v262
        %527 = vmatprep.subr.mxu0 0.0
        %528 = vmatpush1.msra.mxu0 %v263
        %529 = vmatprep.subr.mxu0 0.0
        %530 = vmatpush1.msra.mxu0 %v264
        %531 = vmatprep.subr.mxu0 0.0
        %532 = vmatpush1.msra.mxu0 %v265
        %533 = vmatprep.subr.mxu0 0.0
        %534 = vmatpush1.msra.mxu0 0.0
        %535 = vmatprep.subr.mxu0 0.0
        %536 = vmatpush1.msra.mxu0 0.0
        %537 = vmatprep.subr.mxu0 0.0
        %538 = vmatpush1.msra.mxu0 0.0
        %539 = vmatprep.subr.mxu0 0.0
        %540 = vmatpush1.msra.mxu0 0.0
        %541 = vmatprep.subr.mxu0 0.0
        %542 = vmatpush1.msra.mxu0 0.0
        %543 = vmatprep.subr.mxu0 0.0
        %544 = vmatpush1.msra.mxu0 0.0
        %545 = vmatprep.subr.mxu0 0.0
        %546 = vmatpush1.msra.mxu0 0.0
        %547 = vmatprep.subr.mxu0 0.0
        %548 = vmatpush1.msra.mxu0 0.0
        %549 = vmatprep.subr.mxu0 0.0
        %550 = vmatpush1.msra.mxu0 0.0
        %551 = vmatprep.subr.mxu0 0.0
        %552 = vmatpush1.msra.mxu0 0.0
        %553 = vmatprep.subr.mxu0 0.0
        %554 = vmatpush1.msra.mxu0 0.0
        %555 = vmatprep.subr.mxu0 0.0
        %556 = vmatpush1.msra.mxu0 0.0
        %557 = vmatprep.subr.mxu0 0.0
        %558 = vmatpush1.msra.mxu0 0.0
        %559 = vmatprep.subr.mxu0 0.0
        %560 = vmatpush1.msra.mxu0 0.0
        %561 = vmatprep.subr.mxu0 0.0
        %562 = vmatpush1.msra.mxu0 0.0
        %563 = vmatprep.subr.mxu0 0.0
        %564 = vmatpush1.msra.mxu0 0.0
        %565 = vmatprep.mubr.f32.mxu0 0.0
        %566 = vmatmul.mubr.f32.gmra.mrb[0].mxu0 %v498
        %v567 = vpop.f32.mrb[0].mxu0
        %v568 = vadd.f32 0.0, %v567
        %v569 = vpop.f32.mrb[0].mxu0
        %570 = vdwg.mxu0
        %s571 = scalar_lea.vmem %s240, 2
        %v572 = vld [vmem:[%s571] sm:$0x3]
        %v573 = vadd.f32 %v572, %v568
        %574 = vst.msk [vmem:[%s571] sm:$0x3] %vm420, %v573
        %s575 = scalar_lea.vmem %s200, 128 [#allocation2]
        %v576 = vld [vmem:[%s575] sm:$0xff]
        %v577 = vld [vmem:[%s575 + $0x8] sm:$0xff]
        %v578 = vld [vmem:[%s575 + $0x10] sm:$0xff]
        %v579 = vld [vmem:[%s575 + $0x18] sm:$0xff]
        %v580 = vld [vmem:[%s575 + $0x20] sm:$0xff]
        %v581 = vld [vmem:[%s575 + $0x28] sm:$0xff]
        %v582 = vld [vmem:[%s575 + $0x30] sm:$0xff]
        %v583 = vld [vmem:[%s575 + $0x38] sm:$0xff]
        %584 = vmatprep.subr.mxu0 0.0
        %585 = vmatpush1.msra.mxu0 %v576
        %586 = vmatprep.subr.mxu0 0.0
        %587 = vmatpush1.msra.mxu0 %v577
        %588 = vmatprep.subr.mxu0 0.0
        %589 = vmatpush1.msra.mxu0 %v578
        %590 = vmatprep.subr.mxu0 0.0
        %591 = vmatpush1.msra.mxu0 %v579
        %592 = vmatprep.subr.mxu0 0.0
        %593 = vmatpush1.msra.mxu0 %v580
        %594 = vmatprep.subr.mxu0 0.0
        %595 = vmatpush1.msra.mxu0 %v581
        %596 = vmatprep.subr.mxu0 0.0
        %597 = vmatpush1.msra.mxu0 %v582
        %598 = vmatprep.subr.mxu0 0.0
        %599 = vmatpush1.msra.mxu0 %v583
        %600 = vmatprep.subr.mxu0 0.0
        %601 = vmatpush1.msra.mxu0 0.0
        %602 = vmatprep.subr.mxu0 0.0
        %603 = vmatpush1.msra.mxu0 0.0
        %604 = vmatprep.subr.mxu0 0.0
        %605 = vmatpush1.msra.mxu0 0.0
        %606 = vmatprep.subr.mxu0 0.0
        %607 = vmatpush1.msra.mxu0 0.0
        %608 = vmatprep.subr.mxu0 0.0
        %609 = vmatpush1.msra.mxu0 0.0
        %610 = vmatprep.subr.mxu0 0.0
        %611 = vmatpush1.msra.mxu0 0.0
        %612 = vmatprep.subr.mxu0 0.0
        %613 = vmatpush1.msra.mxu0 0.0
        %614 = vmatprep.subr.mxu0 0.0
        %615 = vmatpush1.msra.mxu0 0.0
        %616 = vmatprep.subr.mxu0 0.0
        %617 = vmatpush1.msra.mxu0 0.0
        %618 = vmatprep.subr.mxu0 0.0
        %619 = vmatpush1.msra.mxu0 0.0
        %620 = vmatprep.subr.mxu0 0.0
        %621 = vmatpush1.msra.mxu0 0.0
        %622 = vmatprep.subr.mxu0 0.0
        %623 = vmatpush1.msra.mxu0 0.0
        %624 = vmatprep.subr.mxu0 0.0
        %625 = vmatpush1.msra.mxu0 0.0
        %626 = vmatprep.subr.mxu0 0.0
        %627 = vmatpush1.msra.mxu0 0.0
        %628 = vmatprep.subr.mxu0 0.0
        %629 = vmatpush1.msra.mxu0 0.0
        %630 = vmatprep.subr.mxu0 0.0
        %631 = vmatpush1.msra.mxu0 0.0
        %632 = vmatprep.subr.mxu0 0.0
        %633 = vmatpush1.msra.mxu0 0.0
        %634 = vmatprep.subr.mxu0 0.0
        %635 = vmatpush1.msra.mxu0 0.0
        %636 = vmatprep.subr.mxu0 0.0
        %637 = vmatpush1.msra.mxu0 0.0
        %638 = vmatprep.subr.mxu0 0.0
        %639 = vmatpush1.msra.mxu0 0.0
        %640 = vmatprep.subr.mxu0 0.0
        %641 = vmatpush1.msra.mxu0 0.0
        %642 = vmatprep.subr.mxu0 0.0
        %643 = vmatpush1.msra.mxu0 0.0
        %644 = vmatprep.subr.mxu0 0.0
        %645 = vmatpush1.msra.mxu0 0.0
        %646 = vmatprep.subr.mxu0 0.0
        %647 = vmatpush1.msra.mxu0 0.0
        %648 = vmatprep.mubr.f32.mxu0 0.0
        %649 = vmatmul.mubr.f32.gmra.mrb[0].mxu0 %v276
        %v650 = vpop.f32.mrb[0].mxu0
        %v651 = vadd.f32 0.0, %v650
        %v652 = vpop.f32.mrb[0].mxu0
        %653 = vdwg.mxu0
        %654 = vmatprep.subr.mxu0 0.0
        %655 = vmatpush1.msra.mxu0 %v250
        %656 = vmatprep.subr.mxu0 0.0
        %657 = vmatpush1.msra.mxu0 %v251
        %658 = vmatprep.subr.mxu0 0.0
        %659 = vmatpush1.msra.mxu0 %v252
        %660 = vmatprep.subr.mxu0 0.0
        %661 = vmatpush1.msra.mxu0 %v253
        %662 = vmatprep.subr.mxu0 0.0
        %663 = vmatpush1.msra.mxu0 %v254
        %664 = vmatprep.subr.mxu0 0.0
        %665 = vmatpush1.msra.mxu0 %v255
        %666 = vmatprep.subr.mxu0 0.0
        %667 = vmatpush1.msra.mxu0 %v256
        %668 = vmatprep.subr.mxu0 0.0
        %669 = vmatpush1.msra.mxu0 %v257
        %670 = vmatprep.subr.mxu0 0.0
        %671 = vmatpush1.msra.mxu0 %v258
        %672 = vmatprep.subr.mxu0 0.0
        %673 = vmatpush1.msra.mxu0 %v259
        %674 = vmatprep.subr.mxu0 0.0
        %675 = vmatpush1.msra.mxu0 %v260
        %676 = vmatprep.subr.mxu0 0.0
        %677 = vmatpush1.msra.mxu0 %v261
        %678 = vmatprep.subr.mxu0 0.0
        %679 = vmatpush1.msra.mxu0 %v262
        %680 = vmatprep.subr.mxu0 0.0
        %681 = vmatpush1.msra.mxu0 %v263
        %682 = vmatprep.subr.mxu0 0.0
        %683 = vmatpush1.msra.mxu0 %v264
        %684 = vmatprep.subr.mxu0 0.0
        %685 = vmatpush1.msra.mxu0 %v265
        %686 = vmatprep.subr.mxu0 0.0
        %687 = vmatpush1.msra.mxu0 0.0
        %688 = vmatprep.subr.mxu0 0.0
        %689 = vmatpush1.msra.mxu0 0.0
        %690 = vmatprep.subr.mxu0 0.0
        %691 = vmatpush1.msra.mxu0 0.0
        %692 = vmatprep.subr.mxu0 0.0
        %693 = vmatpush1.msra.mxu0 0.0
        %694 = vmatprep.subr.mxu0 0.0
        %695 = vmatpush1.msra.mxu0 0.0
        %696 = vmatprep.subr.mxu0 0.0
        %697 = vmatpush1.msra.mxu0 0.0
        %698 = vmatprep.subr.mxu0 0.0
        %699 = vmatpush1.msra.mxu0 0.0
        %700 = vmatprep.subr.mxu0 0.0
        %701 = vmatpush1.msra.mxu0 0.0
        %702 = vmatprep.subr.mxu0 0.0
        %703 = vmatpush1.msra.mxu0 0.0
        %704 = vmatprep.subr.mxu0 0.0
        %705 = vmatpush1.msra.mxu0 0.0
        %706 = vmatprep.subr.mxu0 0.0
        %707 = vmatpush1.msra.mxu0 0.0
        %708 = vmatprep.subr.mxu0 0.0
        %709 = vmatpush1.msra.mxu0 0.0
        %710 = vmatprep.subr.mxu0 0.0
        %711 = vmatpush1.msra.mxu0 0.0
        %712 = vmatprep.subr.mxu0 0.0
        %713 = vmatpush1.msra.mxu0 0.0
        %714 = vmatprep.subr.mxu0 0.0
        %715 = vmatpush1.msra.mxu0 0.0
        %716 = vmatprep.subr.mxu0 0.0
        %717 = vmatpush1.msra.mxu0 0.0
        %718 = vmatprep.mubr.f32.mxu0 0.0
        %719 = vmatmul.mubr.f32.gmra.mrb[0].mxu0 %v651
        %v720 = vpop.f32.mrb[0].mxu0
        %v721 = vadd.f32 0.0, %v720
        %v722 = vpop.f32.mrb[0].mxu0
        %723 = vdwg.mxu0
        %s724 = scalar_lea.vmem %s240, 4
        %v725 = vld [vmem:[%s724] sm:$0x3]
        %v726 = vadd.f32 %v725, %v721
        %727 = vst.msk [vmem:[%s724] sm:$0x3] %vm420, %v726
        %p728 = scmp.lt.s32.totalorder %s22, 1
        %s729 = scalar_select %p728, %s22, 1
        %s730 = smul.addr %s729, 3
        %s731 = smul.addr %s730, 2
        %s732 = scalar_lea.vmem %s3, %s731
        // Predicated region
        $region45: #{image_water_style_forward.2} parent=31 // pred_check
          %p733 = pneg %p123
        $region46: #{image_water_style_forward.2} parent=31 // pred_check_branch
          %735 = sbr.rel (%p733) target = $region48
        $region47: #{image_water_style_forward.2} parent=31 // pred_region
          _
        $region48: #{image_water_style_forward.2} parent=31 // pred_fallthru
          _
      $region32: #{image_water_style_forward.2} parent=5 // pred_fallthru
        _
      %p736 = scmp.le.s32.totalorder 2, %s13
      // Predicated region
      $region49: #{image_water_style_forward.2} parent=5 // pred_check
        %p737 = pneg %p736
      $region50: #{image_water_style_forward.2} parent=5 // pred_check_branch
        %739 = sbr.rel (%p737) target = $region52
      $region51: #{image_water_style_forward.2} parent=5 // pred_region
        %s740 = ssub.s32 %s13, 2
        // Predicated region
        $region53: #{image_water_style_forward.2} parent=51 // pred_check
          %p741 = pneg %p129
        $region54: #{image_water_style_forward.2} parent=51 // pred_check_branch
          %743 = sbr.rel (%p741) target = $region56
        $region55: #{image_water_style_forward.2} parent=51 // pred_region
          %p744 = scmp.lt.s32.totalorder %s24, 1
          %s745 = scalar_select %p744, %s24, 1
          %s746 = smul.addr %s745, 3
          %s747 = smul.addr %s746, 2
          %s748 = scalar_lea.vmem %s3, %s747
        $region56: #{image_water_style_forward.2} parent=51 // pred_fallthru
          _
      $region52: #{image_water_style_forward.2} parent=5 // pred_fallthru
        _
    $region6: #{image_water_style_forward.2} parent=1 // loop_footer
      %s17 = sadd.s32 1, %s13
    $region7: #{image_water_style_forward.2} parent=1 // loop_footer_branch
      %12 = sbr.rel target = $region3
    $region8: #{image_water_style_forward.2} parent=1 // loop_exit
      _
    %749 = vsyncpa [#allocation3], 1
    %s750 = scalar_lea.sflag [#allocation3], 1
    %751 = vsyncpa %s750, 1
    %752 = vsyncpa [#allocation5], 1

</llo_original>
